<compile_context>
chip_gen: v6e
topology: v6e:2x2x1
jax: 0.10.0
libtpu: 0.0.40
codegen_flags: <defaults>
</compile_context>

<pallas_src>
import functools

import jax
import jax.numpy as jnp
from jax.experimental import pallas as pl
from jax.experimental.pallas import tpu as pltpu

_FUSE_NH_MAX = 256  # use the single fused K*C contraction only up to this lane width


def _cdiv(a, b):
    return -(-a // b)


def _round_up(a, b):
    return _cdiv(a, b) * b


def _out_conv1d_kernel(x_ref, w1_ref, b1_ref, g_ref, bt_ref, p_ref, sv_ref, sb_ref,
                       w2_ref, b2_ref, o_ref, xp_ref, *,
                       C, K, L, Wseg, Nh, pad, Bt, eps, fuse_conv, exact_recip):
    Ntot = Nh + K - 1

    # ---- Zero only the pad/halo columns (data columns are overwritten below) ----
    zero_runs = [(0, pad)]
    for b in range(Bt):
        start = b * Wseg + pad + L
        end = (b + 1) * Wseg + pad if b < Bt - 1 else Ntot
        zero_runs.append((start, end - start))
    for start, length in zero_runs:
        if length > 0:
            xp_ref[:, start:start + length] = jnp.zeros((C, length), xp_ref.dtype)

    # ---- Lane-pack the Bt batches: batch b occupies lanes [b*Wseg, (b+1)*Wseg) ----
    for b in range(Bt):
        xp_ref[:, b * Wseg + pad:b * Wseg + pad + L] = x_ref[b].astype(xp_ref.dtype)
    xp = xp_ref[...]                                           # (C, Ntot)

    # ---- Conv1d(C, C, K, padding=pad) on the MXU ----
    if fuse_conv:
        # Single contraction over K*C (small Nh: im2col temp is cheap).
        xcol = jnp.concatenate([xp[:, k:k + Nh] for k in range(K)], axis=0)  # (K*C, Nh)
        h = jnp.dot(w1_ref[...], xcol, preferred_element_type=jnp.float32)
    else:
        # K accumulating matmuls: one shifted view live at a time (large Nh).
        h = jnp.dot(w1_ref[0], xp[:, 0:Nh], preferred_element_type=jnp.float32)
        for k in range(1, K):
            h = h + jnp.dot(w1_ref[k], xp[:, k:k + Nh],
                            preferred_element_type=jnp.float32)
    h = h + b1_ref[...]                                        # (C, Nh) f32

    # ---- GroupNorm: exact per-batch stats via small matmuls (selectors hoisted) ----
    sv = sv_ref[...]                                           # (Nh, Bt) valid columns
    s1 = jnp.dot(h, sv, preferred_element_type=jnp.float32)    # (C, Bt)  sum(h)
    s2 = jnp.dot(h * h, sv, preferred_element_type=jnp.float32)  # (C, Bt) sum(h^2)
    mom = jnp.dot(p_ref[...], jnp.concatenate([s1, s2], axis=1),
                  preferred_element_type=jnp.float32)          # (C, 2*Bt), /(Cg*L) baked in
    mean_cb = mom[:, :Bt]
    var_cb = mom[:, Bt:] - mean_cb * mean_cb                   # biased variance (GN)
    inv_cb = jax.lax.rsqrt(var_cb + eps)
    scale_cb = g_ref[...] * inv_cb                             # (C, Bt)
    shift_cb = bt_ref[...] - mean_cb * scale_cb                # (C, Bt)

    sb = sb_ref[...]                                           # (Bt, Nh) segment selector
    scale = jnp.dot(scale_cb, sb, preferred_element_type=jnp.float32)  # (C, Nh)
    shift = jnp.dot(shift_cb, sb, preferred_element_type=jnp.float32)  # (C, Nh)
    hn = h * scale + shift

    # ---- Mish: x*tanh(softplus(x)) = x*(1 - 2/((1+e^x)^2 + 1)); overflow-safe ----
    t = jnp.exp(hn)
    den = t * (t + 2.0) + 2.0
    if exact_recip:
        act = hn - 2.0 * hn / den                              # exact divide (f32 path)
    else:
        act = hn * (1.0 - 2.0 * pl.reciprocal(den, approx=True))  # EUP approx (bf16 path)

    # ---- Conv1d(C, Cout, 1) == (Cout, C) @ (C, Nh) + bias ----
    out = jnp.dot(w2_ref[...], act.astype(w2_ref.dtype),
                  preferred_element_type=jnp.float32) + b2_ref[...]   # (Cout, Nh)

    # ---- Per-batch stores: output already in (Bt, Cout, L) -- no wrapper transpose ----
    for b in range(Bt):
        o_ref[b] = out[:, b * Wseg:b * Wseg + L].astype(o_ref.dtype)


def out_conv1d_block(x, w1, b1, gamma, beta, w2, b2, *, num_groups, eps=1e-5,
                     batch_tile=None, mxu_dtype=jnp.float32,
                     vmem_budget_bytes=40 * 1024 * 1024):
    """Fused OutConv1DBlock forward.

    x: (B, C, L) (NCL). w1: (C, C, K), b1: (C,). gamma/beta: (C,).
    w2: (Cout, C, 1) or (Cout, C), b2: (Cout,). Returns (B, Cout, L).
    """
    out_dtype = x.dtype
    B, C, L = x.shape
    K = w1.shape[-1]
    pad = (K - 1) // 2
    Cout = w2.shape[0]
    G = num_groups
    assert C % G == 0, "embed_dim must be divisible by num_groups"
    Cg = C // G

    # Per-batch lane segment (includes conv halo); lane-align segments for long L.
    Wseg = L + K - 1
    if L >= 128:
        Wseg = _round_up(Wseg, 128)

    itemsize = jnp.dtype(mxu_dtype).itemsize
    out_itemsize = jnp.dtype(out_dtype).itemsize

    def est_vmem(bt):
        nh = bt * Wseg
        ntot = nh + K - 1
        b_in = 2 * bt * C * L * itemsize                     # double-buffered input block
        b_out = 2 * bt * Cout * L * out_itemsize             # double-buffered output block
        b_xp = C * ntot * itemsize                           # packed-input scratch
        b_w = (K * C * C + C * C + 2 * Cout * C + 4 * C + Cout) * 4
        b_masks = 2 * 2 * nh * bt * 4                        # sv + sb
        b_live = 6 * C * nh * 4                              # h, h^2, scale, shift, act, out
        if nh <= _FUSE_NH_MAX:
            b_live += K * C * nh * itemsize                  # fused-path im2col temp
        return b_in + b_out + b_xp + b_w + b_masks + b_live

    # Lane density target ~512 lanes/step; keep >=2 grid steps when B>1 (2 TCs on v7x);
    # shrink the tile under the VMEM budget.
    if batch_tile is None:
        batch_tile = max(1, min(B, _cdiv(512, Wseg)))
    Bt = batch_tile
    if B > 1 and _cdiv(B, Bt) < 2:
        Bt = _cdiv(B, 2)
    while Bt > 1 and est_vmem(Bt) > vmem_budget_bytes:
        Bt -= 1
    nb = _cdiv(B, Bt)
    Bpad = nb * Bt

    Nh = Bt * Wseg
    Ntot = Nh + K - 1
    fuse_conv = Nh <= _FUSE_NH_MAX

    # NOTE: padded batch rows (when B % Bt != 0) are all-zero; they pass through
    # GroupNorm with ~zero variance (rsqrt(eps) keeps it finite) and are sliced off.
    if Bpad != B:
        x = jnp.pad(x, ((0, Bpad - B), (0, 0), (0, 0)))
    x = x.astype(mxu_dtype)   # bf16 path: the input BlockSpec DMA moves bf16, not f32

    if fuse_conv:
        # Fused conv1 weight (C, K*C), tap-major along the contraction dim.
        w1k = jnp.transpose(w1, (0, 2, 1)).reshape(C, K * C).astype(mxu_dtype)
        w1_spec = pl.BlockSpec((C, K * C), lambda i: (0, 0))
    else:
        # Per-tap weights (K, Cout=C, Cin=C) for the accumulating-matmul path.
        w1k = jnp.transpose(w1, (2, 0, 1)).astype(mxu_dtype)
        w1_spec = pl.BlockSpec((K, C, C), lambda i: (0, 0, 0))

    w2m = jnp.asarray(w2).reshape(Cout, C).astype(mxu_dtype)
    b1c = b1.reshape(C, 1).astype(jnp.float32)
    gc = gamma.reshape(C, 1).astype(jnp.float32)
    bc = beta.reshape(C, 1).astype(jnp.float32)
    b2c = b2.reshape(Cout, 1).astype(jnp.float32)

    # GroupNorm projector P[c,c'] = [group(c)==group(c')] / (Cg*L).
    gid = jnp.arange(C) // Cg
    P = (gid[:, None] == gid[None, :]).astype(jnp.float32) / float(Cg * L)

    # Grid-invariant selector masks, hoisted out of the kernel (VMEM-resident inputs).
    lane = jnp.arange(Nh)
    seg = lane // Wseg
    rel = lane % Wseg
    onehot = (seg[:, None] == jnp.arange(Bt)[None, :]).astype(jnp.float32)  # (Nh, Bt)
    sv = onehot * (rel < L).astype(jnp.float32)[:, None]   # valid (non-pad) columns
    sb = jnp.transpose(onehot)                             # (Bt, Nh) segment membership

    exact_recip = jnp.dtype(mxu_dtype) == jnp.dtype(jnp.float32)

    kern = functools.partial(_out_conv1d_kernel, C=C, K=K, L=L, Wseg=Wseg, Nh=Nh,
                             pad=pad, Bt=Bt, eps=eps, fuse_conv=fuse_conv,
                             exact_recip=exact_recip)

    # Shape-derived VMEM budget; capped below v7x's 64 MiB/TC physical VMEM.
    vmem_limit = int(min(max(int(1.25 * est_vmem(Bt)) + (4 << 20), 16 << 20), 60 << 20))

    out = pl.pallas_call(
        kern,
        out_shape=jax.ShapeDtypeStruct((nb, Bt, Cout, L), out_dtype),
        grid=(nb,),
        in_specs=[
            pl.BlockSpec((Bt, C, L), lambda i: (i, 0, 0)),   # input, Bt batches / step
            w1_spec,                                         # conv1 weight
            pl.BlockSpec((C, 1), lambda i: (0, 0)),          # conv1 bias
            pl.BlockSpec((C, 1), lambda i: (0, 0)),          # GN gamma
            pl.BlockSpec((C, 1), lambda i: (0, 0)),          # GN beta
            pl.BlockSpec((C, C), lambda i: (0, 0)),          # GN group projector
            pl.BlockSpec((Nh, Bt), lambda i: (0, 0)),        # valid-column selector
            pl.BlockSpec((Bt, Nh), lambda i: (0, 0)),        # segment selector
            pl.BlockSpec((Cout, C), lambda i: (0, 0)),       # 1x1 conv weight
            pl.BlockSpec((Cout, 1), lambda i: (0, 0)),       # 1x1 conv bias
        ],
        out_specs=pl.BlockSpec((None, Bt, Cout, L), lambda i: (i, 0, 0, 0)),
        scratch_shapes=[pltpu.VMEM((C, Ntot), mxu_dtype)],   # padded lane-packed input
        compiler_params=pltpu.CompilerParams(
            dimension_semantics=("parallel",),
            vmem_limit_bytes=vmem_limit,
        ),
    )(x, w1k, b1c, gc, bc, P, sv, sb, w2m, b2c)

    # (nb, Bt, Cout, L) -> (Bpad, Cout, L) is a contiguous reshape (no transpose pass).
    return out.reshape(Bpad, Cout, L)[:B]


def _reference(x, w1, b1, gamma, beta, w2, b2, num_groups, eps=1e-5):
    # Pure-JAX reference of the PyTorch forward (verification only).
    pad = (w1.shape[-1] - 1) // 2
    h = jax.lax.conv_general_dilated(
        x, w1, window_strides=(1,), padding=[(pad, pad)],
        dimension_numbers=("NCH", "OIH", "NCH"))
    h = h + b1[None, :, None]
    B, C, L = h.shape
    hg = h.reshape(B, num_groups, -1)
    mean = hg.mean(axis=-1, keepdims=True)
    var = hg.var(axis=-1, keepdims=True)
    hn = ((hg - mean) / jnp.sqrt(var + eps)).reshape(B, C, L)
    hn = hn * gamma[None, :, None] + beta[None, :, None]
    act = hn * jnp.tanh(jax.nn.softplus(hn))
    return jnp.einsum("oc,bcl->bol", w2, act) + b2[None, :, None]


if __name__ == "__main__":
    # Small shapes consistent with the module.
    B, embed_dim, L = 2, 32, 16
    out_channels, num_groups_out, K = 8, 8, 5

    key = jax.random.PRNGKey(0)
    ks = jax.random.split(key, 7)
    x = jax.random.normal(ks[0], (B, embed_dim, L), jnp.float32)
    w1 = 0.1 * jax.random.normal(ks[1], (embed_dim, embed_dim, K), jnp.float32)
    b1 = 0.1 * jax.random.normal(ks[2], (embed_dim,), jnp.float32)
    gamma = 1.0 + 0.1 * jax.random.normal(ks[3], (embed_dim,), jnp.float32)
    beta = 0.1 * jax.random.normal(ks[4], (embed_dim,), jnp.float32)
    w2 = 0.1 * jax.random.normal(ks[5], (out_channels, embed_dim, 1), jnp.float32)
    b2 = 0.1 * jax.random.normal(ks[6], (out_channels,), jnp.float32)

    ref = _reference(x, w1, b1, gamma, beta, w2[:, :, 0], b2, num_groups_out)

    # f32-MXU path (exact Mish reciprocal).
    out = out_conv1d_block(x, w1, b1, gamma, beta, w2, b2, num_groups=num_groups_out)
    out = jax.block_until_ready(out)
    assert out.shape == (B, out_channels, L)
    err = float(jnp.max(jnp.abs(out - ref)))
    assert jnp.allclose(out, ref, rtol=5e-3, atol=5e-3), err

    # bf16-MXU perf path (bf16 operands/DMA; f32 accumulation + f32 GN stats).
    out_bf16 = out_conv1d_block(x, w1, b1, gamma, beta, w2, b2,
                                num_groups=num_groups_out, mxu_dtype=jnp.bfloat16)
    out_bf16 = jax.block_until_ready(out_bf16)
    err_bf16 = float(jnp.max(jnp.abs(out_bf16 - ref)))
    assert jnp.allclose(out_bf16, ref, rtol=5e-2, atol=5e-2), err_bf16

    print("KERNEL_OK")
</pallas_src>

<mosaic_0001>
module attributes {stable_mosaic.version = 11 : i64} {
  func.func @_out_conv1d_kernel(%arg0: i32, %arg1: memref<1x32x16xf32, #tpu.memory_space<vmem>>, %arg2: memref<32x160xf32, #tpu.memory_space<vmem>>, %arg3: memref<32x1xf32, #tpu.memory_space<vmem>>, %arg4: memref<32x1xf32, #tpu.memory_space<vmem>>, %arg5: memref<32x1xf32, #tpu.memory_space<vmem>>, %arg6: memref<32x32xf32, #tpu.memory_space<vmem>>, %arg7: memref<20x1xf32, #tpu.memory_space<vmem>>, %arg8: memref<1x20xf32, #tpu.memory_space<vmem>>, %arg9: memref<8x32xf32, #tpu.memory_space<vmem>>, %arg10: memref<8x1xf32, #tpu.memory_space<vmem>>, %arg11: memref<1x1x8x16xf32, #tpu.memory_space<vmem>>, %arg12: memref<32x24xf32, #tpu.memory_space<vmem>>) attributes {dimension_semantics = [#tpu.dimension_semantics<parallel>], iteration_bounds = array<i64: 2>, scalar_prefetch = 0 : i64, scratch_operands = 1 : i64, tpu.core_type = #tpu.core_type<tc>, window_params = [{transform_indices = @transform_0, window_bounds = array<i64: 1, 32, 16>}, {pipeline_mode = #tpu.pipeline_mode<synchronous>, transform_indices = @transform_1, window_bounds = array<i64: 32, 160>}, {pipeline_mode = #tpu.pipeline_mode<synchronous>, transform_indices = @transform_2, window_bounds = array<i64: 32, 1>}, {pipeline_mode = #tpu.pipeline_mode<synchronous>, transform_indices = @transform_3, window_bounds = array<i64: 32, 1>}, {pipeline_mode = #tpu.pipeline_mode<synchronous>, transform_indices = @transform_4, window_bounds = array<i64: 32, 1>}, {pipeline_mode = #tpu.pipeline_mode<synchronous>, transform_indices = @transform_5, window_bounds = array<i64: 32, 32>}, {pipeline_mode = #tpu.pipeline_mode<synchronous>, transform_indices = @transform_6, window_bounds = array<i64: 20, 1>}, {pipeline_mode = #tpu.pipeline_mode<synchronous>, transform_indices = @transform_7, window_bounds = array<i64: 1, 20>}, {pipeline_mode = #tpu.pipeline_mode<synchronous>, transform_indices = @transform_8, window_bounds = array<i64: 8, 32>}, {pipeline_mode = #tpu.pipeline_mode<synchronous>, transform_indices = @transform_9, window_bounds = array<i64: 8, 1>}, {transform_indices = @transform_10, window_bounds = array<i64: 1, 1, 8, 16>}]} {
    %cst = arith.constant 0.000000e+00 : f32
    %0 = vector.broadcast %cst : f32 to vector<32x2xf32>
    %c0 = arith.constant 0 : index
    %c0_0 = arith.constant 0 : index
    %1 = vector.load %arg12[%c0, %c0_0] : memref<32x24xf32, #tpu.memory_space<vmem>>, vector<32x2xf32>
    tpu.vector_store %arg12[%c0, %c0_0], %0 {strides = array<i32>} : memref<32x24xf32, #tpu.memory_space<vmem>>, vector<32x2xf32>,
    %cst_1 = arith.constant 0.000000e+00 : f32
    %2 = vector.broadcast %cst_1 : f32 to vector<32x6xf32>
    %c0_2 = arith.constant 0 : index
    %c18 = arith.constant 18 : index
    %3 = vector.load %arg12[%c0_2, %c18] : memref<32x24xf32, #tpu.memory_space<vmem>>, vector<32x6xf32>
    tpu.vector_store %arg12[%c0_2, %c18], %2 {strides = array<i32>} : memref<32x24xf32, #tpu.memory_space<vmem>>, vector<32x6xf32>,
    %c0_3 = arith.constant 0 : index
    %c0_4 = arith.constant 0 : index
    %c0_5 = arith.constant 0 : index
    %4 = vector.load %arg1[%c0_3, %c0_4, %c0_5] : memref<1x32x16xf32, #tpu.memory_space<vmem>>, vector<1x32x16xf32>
    %5 = vector.shape_cast %4 : vector<1x32x16xf32> to vector<32x16xf32>
    %c0_6 = arith.constant 0 : index
    %c2 = arith.constant 2 : index
    %6 = vector.load %arg12[%c0_6, %c2] : memref<32x24xf32, #tpu.memory_space<vmem>>, vector<32x16xf32>
    tpu.vector_store %arg12[%c0_6, %c2], %5 {strides = array<i32>} : memref<32x24xf32, #tpu.memory_space<vmem>>, vector<32x16xf32>,
    %c0_7 = arith.constant 0 : index
    %c0_8 = arith.constant 0 : index
    %7 = vector.load %arg12[%c0_7, %c0_8] : memref<32x24xf32, #tpu.memory_space<vmem>>, vector<32x24xf32>
    %8 = vector.extract_strided_slice %7 {offsets = [0, 0], sizes = [32, 20], strides = [1, 1]} : vector<32x24xf32> to vector<32x20xf32>
    %9 = vector.extract_strided_slice %7 {offsets = [0, 1], sizes = [32, 20], strides = [1, 1]} : vector<32x24xf32> to vector<32x20xf32>
    %10 = vector.extract_strided_slice %7 {offsets = [0, 2], sizes = [32, 20], strides = [1, 1]} : vector<32x24xf32> to vector<32x20xf32>
    %11 = vector.extract_strided_slice %7 {offsets = [0, 3], sizes = [32, 20], strides = [1, 1]} : vector<32x24xf32> to vector<32x20xf32>
    %12 = vector.extract_strided_slice %7 {offsets = [0, 4], sizes = [32, 20], strides = [1, 1]} : vector<32x24xf32> to vector<32x20xf32>
    %13 = tpu.concatenate %8, %9, %10, %11, %12 in 0 : vector<32x20xf32>, vector<32x20xf32>, vector<32x20xf32>, vector<32x20xf32>, vector<32x20xf32> -> vector<160x20xf32>
    %c0_9 = arith.constant 0 : index
    %c0_10 = arith.constant 0 : index
    %14 = vector.load %arg2[%c0_9, %c0_10] : memref<32x160xf32, #tpu.memory_space<vmem>>, vector<32x160xf32>
    %cst_11 = arith.constant dense<0.000000e+00> : vector<32x20xf32>
    %15 = tpu.matmul %14, %13, %cst_11 {dimension_numbers = #tpu.dot_dimension_numbers<[1], [0], [0], [1], [0, 0, 1, 1], [], []>} : vector<32x160xf32>, vector<160x20xf32>, vector<32x20xf32> -> vector<32x20xf32>
    %c0_12 = arith.constant 0 : index
    %c0_13 = arith.constant 0 : index
    %16 = vector.load %arg3[%c0_12, %c0_13] : memref<32x1xf32, #tpu.memory_space<vmem>>, vector<32x1xf32>
    %17 = vector.broadcast %16 : vector<32x1xf32> to vector<32x20xf32>
    %18 = arith.addf %15, %17 : vector<32x20xf32>
    %c0_14 = arith.constant 0 : index
    %c0_15 = arith.constant 0 : index
    %19 = vector.load %arg7[%c0_14, %c0_15] : memref<20x1xf32, #tpu.memory_space<vmem>>, vector<20x1xf32>
    %cst_16 = arith.constant dense<0.000000e+00> : vector<32x1xf32>
    %20 = tpu.matmul %18, %19, %cst_16 {dimension_numbers = #tpu.dot_dimension_numbers<[1], [0], [0], [1], [0, 0, 1, 1], [], []>} : vector<32x20xf32>, vector<20x1xf32>, vector<32x1xf32> -> vector<32x1xf32>
    %21 = arith.mulf %18, %18 : vector<32x20xf32>
    %cst_17 = arith.constant dense<0.000000e+00> : vector<32x1xf32>
    %22 = tpu.matmul %21, %19, %cst_17 {dimension_numbers = #tpu.dot_dimension_numbers<[1], [0], [0], [1], [0, 0, 1, 1], [], []>} : vector<32x20xf32>, vector<20x1xf32>, vector<32x1xf32> -> vector<32x1xf32>
    %c0_18 = arith.constant 0 : index
    %c0_19 = arith.constant 0 : index
    %23 = vector.load %arg6[%c0_18, %c0_19] : memref<32x32xf32, #tpu.memory_space<vmem>>, vector<32x32xf32>
    %24 = tpu.concatenate %20, %22 in 1 : vector<32x1xf32>, vector<32x1xf32> -> vector<32x2xf32>
    %cst_20 = arith.constant dense<0.000000e+00> : vector<32x2xf32>
    %25 = tpu.matmul %23, %24, %cst_20 {dimension_numbers = #tpu.dot_dimension_numbers<[1], [0], [0], [1], [0, 0, 1, 1], [], []>} : vector<32x32xf32>, vector<32x2xf32>, vector<32x2xf32> -> vector<32x2xf32>
    %26 = vector.extract_strided_slice %25 {offsets = [0, 0], sizes = [32, 1], strides = [1, 1]} : vector<32x2xf32> to vector<32x1xf32>
    %27 = vector.extract_strided_slice %25 {offsets = [0, 1], sizes = [32, 1], strides = [1, 1]} : vector<32x2xf32> to vector<32x1xf32>
    %28 = arith.mulf %26, %26 : vector<32x1xf32>
    %29 = arith.subf %27, %28 : vector<32x1xf32>
    %cst_21 = arith.constant 9.99999974E-6 : f32
    %30 = vector.broadcast %cst_21 : f32 to vector<32x1xf32>
    %31 = arith.addf %29, %30 : vector<32x1xf32>
    %32 = math.rsqrt %31 : vector<32x1xf32>
    %c0_22 = arith.constant 0 : index
    %c0_23 = arith.constant 0 : index
    %33 = vector.load %arg4[%c0_22, %c0_23] : memref<32x1xf32, #tpu.memory_space<vmem>>, vector<32x1xf32>
    %34 = arith.mulf %33, %32 : vector<32x1xf32>
    %c0_24 = arith.constant 0 : index
    %c0_25 = arith.constant 0 : index
    %35 = vector.load %arg5[%c0_24, %c0_25] : memref<32x1xf32, #tpu.memory_space<vmem>>, vector<32x1xf32>
    %36 = arith.mulf %26, %34 : vector<32x1xf32>
    %37 = arith.subf %35, %36 : vector<32x1xf32>
    %c0_26 = arith.constant 0 : index
    %c0_27 = arith.constant 0 : index
    %38 = vector.load %arg8[%c0_26, %c0_27] : memref<1x20xf32, #tpu.memory_space<vmem>>, vector<1x20xf32>
    %cst_28 = arith.constant dense<0.000000e+00> : vector<32x20xf32>
    %39 = tpu.matmul %34, %38, %cst_28 {dimension_numbers = #tpu.dot_dimension_numbers<[1], [0], [0], [1], [0, 0, 1, 1], [], []>} : vector<32x1xf32>, vector<1x20xf32>, vector<32x20xf32> -> vector<32x20xf32>
    %cst_29 = arith.constant dense<0.000000e+00> : vector<32x20xf32>
    %40 = tpu.matmul %37, %38, %cst_29 {dimension_numbers = #tpu.dot_dimension_numbers<[1], [0], [0], [1], [0, 0, 1, 1], [], []>} : vector<32x1xf32>, vector<1x20xf32>, vector<32x20xf32> -> vector<32x20xf32>
    %41 = arith.mulf %18, %39 : vector<32x20xf32>
    %42 = arith.addf %41, %40 : vector<32x20xf32>
    %43 = math.exp %42 : vector<32x20xf32>
    %cst_30 = arith.constant 2.000000e+00 : f32
    %44 = vector.broadcast %cst_30 : f32 to vector<32x20xf32>
    %45 = arith.addf %43, %44 : vector<32x20xf32>
    %46 = arith.mulf %43, %45 : vector<32x20xf32>
    %cst_31 = arith.constant 2.000000e+00 : f32
    %47 = vector.broadcast %cst_31 : f32 to vector<32x20xf32>
    %48 = arith.addf %46, %47 : vector<32x20xf32>
    %cst_32 = arith.constant 2.000000e+00 : f32
    %49 = vector.broadcast %cst_32 : f32 to vector<32x20xf32>
    %50 = arith.mulf %49, %42 : vector<32x20xf32>
    %51 = arith.divf %50, %48 : vector<32x20xf32>
    %52 = arith.subf %42, %51 : vector<32x20xf32>
    %c0_33 = arith.constant 0 : index
    %c0_34 = arith.constant 0 : index
    %53 = vector.load %arg9[%c0_33, %c0_34] : memref<8x32xf32, #tpu.memory_space<vmem>>, vector<8x32xf32>
    %cst_35 = arith.constant dense<0.000000e+00> : vector<8x20xf32>
    %54 = tpu.matmul %53, %52, %cst_35 {dimension_numbers = #tpu.dot_dimension_numbers<[1], [0], [0], [1], [0, 0, 1, 1], [], []>} : vector<8x32xf32>, vector<32x20xf32>, vector<8x20xf32> -> vector<8x20xf32>
    %c0_36 = arith.constant 0 : index
    %c0_37 = arith.constant 0 : index
    %55 = vector.load %arg10[%c0_36, %c0_37] : memref<8x1xf32, #tpu.memory_space<vmem>>, vector<8x1xf32>
    %56 = vector.broadcast %55 : vector<8x1xf32> to vector<8x20xf32>
    %57 = arith.addf %54, %56 : vector<8x20xf32>
    %58 = vector.extract_strided_slice %57 {offsets = [0, 0], sizes = [8, 16], strides = [1, 1]} : vector<8x20xf32> to vector<8x16xf32>
    %c0_38 = arith.constant 0 : index
    %c0_39 = arith.constant 0 : index
    %c0_40 = arith.constant 0 : index
    %c0_41 = arith.constant 0 : index
    %59 = vector.load %arg11[%c0_38, %c0_39, %c0_40, %c0_41] : memref<1x1x8x16xf32, #tpu.memory_space<vmem>>, vector<1x1x8x16xf32>
    %60 = vector.shape_cast %59 : vector<1x1x8x16xf32> to vector<8x16xf32>
    %61 = vector.shape_cast %58 : vector<8x16xf32> to vector<1x1x8x16xf32>
    tpu.vector_store %arg11[%c0_38, %c0_39, %c0_40, %c0_41], %61 {strides = array<i32>} : memref<1x1x8x16xf32, #tpu.memory_space<vmem>>, vector<1x1x8x16xf32>,
    return
  }
  func.func @transform_0(%arg0: i32) -> (i32, i32, i32) {
    %c0_i32 = arith.constant 0 : i32
    %c0_i32_0 = arith.constant 0 : i32
    %c0_i32_1 = arith.constant 0 : i32
    return %arg0, %c0_i32, %c0_i32_0 : i32, i32, i32
  }
  func.func @transform_1(%arg0: i32) -> (i32, i32) {
    %c0_i32 = arith.constant 0 : i32
    %c0_i32_0 = arith.constant 0 : i32
    %c0_i32_1 = arith.constant 0 : i32
    return %c0_i32, %c0_i32_0 : i32, i32
  }
  func.func @transform_2(%arg0: i32) -> (i32, i32) {
    %c0_i32 = arith.constant 0 : i32
    %c0_i32_0 = arith.constant 0 : i32
    %c0_i32_1 = arith.constant 0 : i32
    return %c0_i32, %c0_i32_0 : i32, i32
  }
  func.func @transform_3(%arg0: i32) -> (i32, i32) {
    %c0_i32 = arith.constant 0 : i32
    %c0_i32_0 = arith.constant 0 : i32
    %c0_i32_1 = arith.constant 0 : i32
    return %c0_i32, %c0_i32_0 : i32, i32
  }
  func.func @transform_4(%arg0: i32) -> (i32, i32) {
    %c0_i32 = arith.constant 0 : i32
    %c0_i32_0 = arith.constant 0 : i32
    %c0_i32_1 = arith.constant 0 : i32
    return %c0_i32, %c0_i32_0 : i32, i32
  }
  func.func @transform_5(%arg0: i32) -> (i32, i32) {
    %c0_i32 = arith.constant 0 : i32
    %c0_i32_0 = arith.constant 0 : i32
    %c0_i32_1 = arith.constant 0 : i32
    return %c0_i32, %c0_i32_0 : i32, i32
  }
  func.func @transform_6(%arg0: i32) -> (i32, i32) {
    %c0_i32 = arith.constant 0 : i32
    %c0_i32_0 = arith.constant 0 : i32
    %c0_i32_1 = arith.constant 0 : i32
    return %c0_i32, %c0_i32_0 : i32, i32
  }
  func.func @transform_7(%arg0: i32) -> (i32, i32) {
    %c0_i32 = arith.constant 0 : i32
    %c0_i32_0 = arith.constant 0 : i32
    %c0_i32_1 = arith.constant 0 : i32
    return %c0_i32, %c0_i32_0 : i32, i32
  }
  func.func @transform_8(%arg0: i32) -> (i32, i32) {
    %c0_i32 = arith.constant 0 : i32
    %c0_i32_0 = arith.constant 0 : i32
    %c0_i32_1 = arith.constant 0 : i32
    return %c0_i32, %c0_i32_0 : i32, i32
  }
  func.func @transform_9(%arg0: i32) -> (i32, i32) {
    %c0_i32 = arith.constant 0 : i32
    %c0_i32_0 = arith.constant 0 : i32
    %c0_i32_1 = arith.constant 0 : i32
    return %c0_i32, %c0_i32_0 : i32, i32
  }
  func.func @transform_10(%arg0: i32) -> (i32, i32, i32, i32) {
    %c0_i32 = arith.constant 0 : i32
    %c0_i32_0 = arith.constant 0 : i32
    %c0_i32_1 = arith.constant 0 : i32
    %c0_i32_2 = arith.constant 0 : i32
    return %arg0, %c0_i32, %c0_i32_0, %c0_i32_1 : i32, i32, i32, i32
  }
}

</mosaic_0001>

<llo_original>
// kernel: tpu_custom_call.1
$region0: #{tpu_custom_call.1}
  #allocation0 [shape = 'u32[]', space=smem, size = 0x4, offset = 0x4, fixed_abs, tag = 'smem constant byte address 0x4 - core index']
  #allocation1 [shape = 'u32[144,128]{1,0:T(1,128)}', space=vmem, size = 0x12000, scoped, tag = 'internal scratch']
  #allocation2 [shape = 'f32[32,24]{1,0:T(8,128)}', space=vmem, size = 0x4000, scoped, tag = 'scratch operand']
  %s0 = inlined_call_operand.vmem [shape: f32[2,32,16], index: 0, kind: input, shape index: {}]
  %s1 = inlined_call_operand.vmem [shape: f32[32,160], index: 1, kind: input, shape index: {}]
  %s2 = inlined_call_operand.vmem [shape: f32[32,1], index: 2, kind: input, shape index: {}]
  %s3 = inlined_call_operand.vmem [shape: f32[32,1], index: 3, kind: input, shape index: {}]
  %s4 = inlined_call_operand.vmem [shape: f32[32,1], index: 4, kind: input, shape index: {}]
  %s5 = inlined_call_operand.vmem [shape: f32[32,32], index: 5, kind: input, shape index: {}]
  %s6 = inlined_call_operand.vmem [shape: f32[20,1], index: 6, kind: input, shape index: {}]
  %s7 = inlined_call_operand.vmem [shape: f32[1,20], index: 7, kind: input, shape index: {}]
  %s8 = inlined_call_operand.vmem [shape: f32[8,32], index: 8, kind: input, shape index: {}]
  %s9 = inlined_call_operand.vmem [shape: f32[8,1], index: 9, kind: input, shape index: {}]
  %s10 = inlined_call_operand.hbm [shape: f32[2,1,8,16], index: 10, kind: output, shape index: {}]
  %s11 = sld [smem:[#allocation0]]
  $region73: #{tpu_custom_call.1} parent=0
    _
  %s13 = ssub.s32 1, %s11
  %s14 = scalar_select 0, %s13, %s11
  $region1: #{tpu_custom_call.1} parent=0
    #allocation3 [shape = 'u8[8192]{0}', space=vmem, size = 0x2000, scoped, tag = 'output window, operand 0']
    #allocation4 [shape = 's32[2]{0}', space=sflag, size = 0x8, scoped, tag = 'scoped memory for tpu_custom_call.1']
    %15 = vsyncpa [#allocation4], 0
    %s16 = scalar_lea.sflag [#allocation4], 1
    %17 = vsyncpa %s16, 0
    loop: start=0, step=1, limit=4
    $region2: #{tpu_custom_call.1} parent=1 // loop_pre_header
      _
    $region3: #{tpu_custom_call.1} parent=1 // loop_header
      %s19 = sphi 0, %s23
      %p20 = scmp.ge.s32.totalorder %s19, 4
      %s29 = sphi 0, %s31
      %s32 = sphi 0, %s29
      %s33 = sphi 0, %s32
      %s49 = sphi 0, %s33
      %s53 = sphi 0, %s53
      %s55 = sphi 0, %s53
      %s56 = sphi 0, %s55
      %s70 = sphi 0, %s56
      %s74 = sphi 0, %s74
      %s76 = sphi 0, %s74
      %s77 = sphi 0, %s76
      %s91 = sphi 0, %s77
      %s95 = sphi 0, %s95
      %s97 = sphi 0, %s95
      %s98 = sphi 0, %s97
      %s112 = sphi 0, %s98
      %s116 = sphi 0, %s116
      %s118 = sphi 0, %s116
      %s119 = sphi 0, %s118
      %s133 = sphi 0, %s119
      %s137 = sphi 0, %s137
      %s139 = sphi 0, %s137
      %s140 = sphi 0, %s139
      %s154 = sphi 0, %s140
      %s158 = sphi 0, %s158
      %s160 = sphi 0, %s158
      %s161 = sphi 0, %s160
      %s175 = sphi 0, %s161
      %s179 = sphi 0, %s179
      %s181 = sphi 0, %s179
      %s182 = sphi 0, %s181
      %s196 = sphi 0, %s182
      %s200 = sphi 0, %s200
      %s202 = sphi 0, %s200
      %s203 = sphi 0, %s202
      %s217 = sphi 0, %s203
      %s221 = sphi 0, %s221
      %s223 = sphi 0, %s221
      %s224 = sphi 0, %s223
      %s238 = sphi 0, %s224
      %s244 = sphi 0, %s246
      %s247 = sphi 0, %s244
      %s248 = sphi 0, %s247
      %s264 = sphi 0, %s248
    $region4: #{tpu_custom_call.1} parent=1 // loop_header_branch
      %22 = sbr.rel (%p20) target = $region8
    $region5: #{tpu_custom_call.1} parent=1 // loop_body
      %s24 = ssub.s32 %s19, 1
      %s25 = ssub.s32 %s19, 2
      %s26 = sadd.s32 %s19, 1
      %s27 = ssub.s32 %s19, %s26
      %p28 = scmp.eq.s32.totalorder %s27, 0
      %s30 = sadd.s32 %s29, 1
      %s31 = scalar_select %p28, %s29, %s30
      %p34 = pneg %p28
      %p35 = scmp.eq.s32.totalorder %s19, 1
      %p36 = por %p34, %p35
      %p37 = scmp.ne.s32.totalorder %s29, %s32
      %p38 = scmp.eq.s32.totalorder %s19, 0
      %p39 = por %p37, %p38
      %p40 = scmp.ne.s32.totalorder %s29, %s32
      %p41 = scmp.eq.s32.totalorder %s24, 1
      %p42 = por %p40, %p41
      %p43 = scmp.ne.s32.totalorder %s32, %s33
      %p44 = scmp.eq.s32.totalorder %s24, 0
      %p45 = por %p43, %p44
      %p46 = scmp.ne.s32.totalorder %s32, %s33
      %p47 = scmp.eq.s32.totalorder %s25, 1
      %p48 = por %p46, %p47
      %p50 = scmp.ne.s32.totalorder %s33, %s49
      %p51 = scmp.eq.s32.totalorder %s25, 0
      %p52 = por %p50, %p51
      %s54 = sadd.s32 %s53, 1
      %p57 = scmp.eq.s32.totalorder %s19, 1
      %p58 = scmp.ne.s32.totalorder %s53, %s55
      %p59 = scmp.eq.s32.totalorder %s19, 0
      %p60 = por %p58, %p59
      %p61 = scmp.ne.s32.totalorder %s53, %s55
      %p62 = scmp.eq.s32.totalorder %s24, 1
      %p63 = por %p61, %p62
      %p64 = scmp.ne.s32.totalorder %s55, %s56
      %p65 = scmp.eq.s32.totalorder %s24, 0
      %p66 = por %p64, %p65
      %p67 = scmp.ne.s32.totalorder %s55, %s56
      %p68 = scmp.eq.s32.totalorder %s25, 1
      %p69 = por %p67, %p68
      %p71 = scmp.ne.s32.totalorder %s56, %s70
      %p72 = scmp.eq.s32.totalorder %s25, 0
      %p73 = por %p71, %p72
      %s75 = sadd.s32 %s74, 1
      %p78 = scmp.eq.s32.totalorder %s19, 1
      %p79 = scmp.ne.s32.totalorder %s74, %s76
      %p80 = scmp.eq.s32.totalorder %s19, 0
      %p81 = por %p79, %p80
      %p82 = scmp.ne.s32.totalorder %s74, %s76
      %p83 = scmp.eq.s32.totalorder %s24, 1
      %p84 = por %p82, %p83
      %p85 = scmp.ne.s32.totalorder %s76, %s77
      %p86 = scmp.eq.s32.totalorder %s24, 0
      %p87 = por %p85, %p86
      %p88 = scmp.ne.s32.totalorder %s76, %s77
      %p89 = scmp.eq.s32.totalorder %s25, 1
      %p90 = por %p88, %p89
      %p92 = scmp.ne.s32.totalorder %s77, %s91
      %p93 = scmp.eq.s32.totalorder %s25, 0
      %p94 = por %p92, %p93
      %s96 = sadd.s32 %s95, 1
      %p99 = scmp.eq.s32.totalorder %s19, 1
      %p100 = scmp.ne.s32.totalorder %s95, %s97
      %p101 = scmp.eq.s32.totalorder %s19, 0
      %p102 = por %p100, %p101
      %p103 = scmp.ne.s32.totalorder %s95, %s97
      %p104 = scmp.eq.s32.totalorder %s24, 1
      %p105 = por %p103, %p104
      %p106 = scmp.ne.s32.totalorder %s97, %s98
      %p107 = scmp.eq.s32.totalorder %s24, 0
      %p108 = por %p106, %p107
      %p109 = scmp.ne.s32.totalorder %s97, %s98
      %p110 = scmp.eq.s32.totalorder %s25, 1
      %p111 = por %p109, %p110
      %p113 = scmp.ne.s32.totalorder %s98, %s112
      %p114 = scmp.eq.s32.totalorder %s25, 0
      %p115 = por %p113, %p114
      %s117 = sadd.s32 %s116, 1
      %p120 = scmp.eq.s32.totalorder %s19, 1
      %p121 = scmp.ne.s32.totalorder %s116, %s118
      %p122 = scmp.eq.s32.totalorder %s19, 0
      %p123 = por %p121, %p122
      %p124 = scmp.ne.s32.totalorder %s116, %s118
      %p125 = scmp.eq.s32.totalorder %s24, 1
      %p126 = por %p124, %p125
      %p127 = scmp.ne.s32.totalorder %s118, %s119
      %p128 = scmp.eq.s32.totalorder %s24, 0
      %p129 = por %p127, %p128
      %p130 = scmp.ne.s32.totalorder %s118, %s119
      %p131 = scmp.eq.s32.totalorder %s25, 1
      %p132 = por %p130, %p131
      %p134 = scmp.ne.s32.totalorder %s119, %s133
      %p135 = scmp.eq.s32.totalorder %s25, 0
      %p136 = por %p134, %p135
      %s138 = sadd.s32 %s137, 1
      %p141 = scmp.eq.s32.totalorder %s19, 1
      %p142 = scmp.ne.s32.totalorder %s137, %s139
      %p143 = scmp.eq.s32.totalorder %s19, 0
      %p144 = por %p142, %p143
      %p145 = scmp.ne.s32.totalorder %s137, %s139
      %p146 = scmp.eq.s32.totalorder %s24, 1
      %p147 = por %p145, %p146
      %p148 = scmp.ne.s32.totalorder %s139, %s140
      %p149 = scmp.eq.s32.totalorder %s24, 0
      %p150 = por %p148, %p149
      %p151 = scmp.ne.s32.totalorder %s139, %s140
      %p152 = scmp.eq.s32.totalorder %s25, 1
      %p153 = por %p151, %p152
      %p155 = scmp.ne.s32.totalorder %s140, %s154
      %p156 = scmp.eq.s32.totalorder %s25, 0
      %p157 = por %p155, %p156
      %s159 = sadd.s32 %s158, 1
      %p162 = scmp.eq.s32.totalorder %s19, 1
      %p163 = scmp.ne.s32.totalorder %s158, %s160
      %p164 = scmp.eq.s32.totalorder %s19, 0
      %p165 = por %p163, %p164
      %p166 = scmp.ne.s32.totalorder %s158, %s160
      %p167 = scmp.eq.s32.totalorder %s24, 1
      %p168 = por %p166, %p167
      %p169 = scmp.ne.s32.totalorder %s160, %s161
      %p170 = scmp.eq.s32.totalorder %s24, 0
      %p171 = por %p169, %p170
      %p172 = scmp.ne.s32.totalorder %s160, %s161
      %p173 = scmp.eq.s32.totalorder %s25, 1
      %p174 = por %p172, %p173
      %p176 = scmp.ne.s32.totalorder %s161, %s175
      %p177 = scmp.eq.s32.totalorder %s25, 0
      %p178 = por %p176, %p177
      %s180 = sadd.s32 %s179, 1
      %p183 = scmp.eq.s32.totalorder %s19, 1
      %p184 = scmp.ne.s32.totalorder %s179, %s181
      %p185 = scmp.eq.s32.totalorder %s19, 0
      %p186 = por %p184, %p185
      %p187 = scmp.ne.s32.totalorder %s179, %s181
      %p188 = scmp.eq.s32.totalorder %s24, 1
      %p189 = por %p187, %p188
      %p190 = scmp.ne.s32.totalorder %s181, %s182
      %p191 = scmp.eq.s32.totalorder %s24, 0
      %p192 = por %p190, %p191
      %p193 = scmp.ne.s32.totalorder %s181, %s182
      %p194 = scmp.eq.s32.totalorder %s25, 1
      %p195 = por %p193, %p194
      %p197 = scmp.ne.s32.totalorder %s182, %s196
      %p198 = scmp.eq.s32.totalorder %s25, 0
      %p199 = por %p197, %p198
      %s201 = sadd.s32 %s200, 1
      %p204 = scmp.eq.s32.totalorder %s19, 1
      %p205 = scmp.ne.s32.totalorder %s200, %s202
      %p206 = scmp.eq.s32.totalorder %s19, 0
      %p207 = por %p205, %p206
      %p208 = scmp.ne.s32.totalorder %s200, %s202
      %p209 = scmp.eq.s32.totalorder %s24, 1
      %p210 = por %p208, %p209
      %p211 = scmp.ne.s32.totalorder %s202, %s203
      %p212 = scmp.eq.s32.totalorder %s24, 0
      %p213 = por %p211, %p212
      %p214 = scmp.ne.s32.totalorder %s202, %s203
      %p215 = scmp.eq.s32.totalorder %s25, 1
      %p216 = por %p214, %p215
      %p218 = scmp.ne.s32.totalorder %s203, %s217
      %p219 = scmp.eq.s32.totalorder %s25, 0
      %p220 = por %p218, %p219
      %s222 = sadd.s32 %s221, 1
      %p225 = scmp.eq.s32.totalorder %s19, 1
      %p226 = scmp.ne.s32.totalorder %s221, %s223
      %p227 = scmp.eq.s32.totalorder %s19, 0
      %p228 = por %p226, %p227
      %p229 = scmp.ne.s32.totalorder %s221, %s223
      %p230 = scmp.eq.s32.totalorder %s24, 1
      %p231 = por %p229, %p230
      %p232 = scmp.ne.s32.totalorder %s223, %s224
      %p233 = scmp.eq.s32.totalorder %s24, 0
      %p234 = por %p232, %p233
      %p235 = scmp.ne.s32.totalorder %s223, %s224
      %p236 = scmp.eq.s32.totalorder %s25, 1
      %p237 = por %p235, %p236
      %p239 = scmp.ne.s32.totalorder %s224, %s238
      %p240 = scmp.eq.s32.totalorder %s25, 0
      %p241 = por %p239, %p240
      %s242 = ssub.s32 %s19, %s26
      %p243 = scmp.eq.s32.totalorder %s242, 0
      %s245 = sadd.s32 %s244, 1
      %s246 = scalar_select %p243, %s244, %s245
      %p249 = pneg %p243
      %p250 = scmp.eq.s32.totalorder %s19, 1
      %p251 = por %p249, %p250
      %p252 = scmp.ne.s32.totalorder %s244, %s247
      %p253 = scmp.eq.s32.totalorder %s19, 0
      %p254 = por %p252, %p253
      %p255 = scmp.ne.s32.totalorder %s244, %s247
      %p256 = scmp.eq.s32.totalorder %s24, 1
      %p257 = por %p255, %p256
      %p258 = scmp.ne.s32.totalorder %s247, %s248
      %p259 = scmp.eq.s32.totalorder %s24, 0
      %p260 = por %p258, %p259
      %p261 = scmp.ne.s32.totalorder %s247, %s248
      %p262 = scmp.eq.s32.totalorder %s25, 1
      %p263 = por %p261, %p262
      %p265 = scmp.ne.s32.totalorder %s248, %s264
      %p266 = scmp.eq.s32.totalorder %s25, 0
      %p267 = por %p265, %p266
      %p268 = scmp.le.s32.totalorder 1, %s19
      %p269 = scmp.lt.s32.totalorder %s19, 3
      %p270 = pnand %p268, %p269
      %p271 = pneg %p270
      // Predicated region
      $region9: #{tpu_custom_call.1} parent=5 // pred_check
        _
      $region10: #{tpu_custom_call.1} parent=5 // pred_check_branch
        %273 = sbr.rel (%p270) target = $region12
      $region11: #{tpu_custom_call.1} parent=5 // pred_region
        %s274 = ssub.s32 %s19, 1
        // Predicated region
        $region13: #{tpu_custom_call.1} parent=11 // pred_check
          %p275 = pneg %p66
        $region14: #{tpu_custom_call.1} parent=11 // pred_check_branch
          %277 = sbr.rel (%p275) target = $region16
        $region15: #{tpu_custom_call.1} parent=11 // pred_region
          _
        $region16: #{tpu_custom_call.1} parent=11 // pred_fallthru
          _
        // Predicated region
        $region17: #{tpu_custom_call.1} parent=11 // pred_check
          %p278 = pneg %p87
        $region18: #{tpu_custom_call.1} parent=11 // pred_check_branch
          %280 = sbr.rel (%p278) target = $region20
        $region19: #{tpu_custom_call.1} parent=11 // pred_region
          _
        $region20: #{tpu_custom_call.1} parent=11 // pred_fallthru
          _
        // Predicated region
        $region21: #{tpu_custom_call.1} parent=11 // pred_check
          %p281 = pneg %p108
        $region22: #{tpu_custom_call.1} parent=11 // pred_check_branch
          %283 = sbr.rel (%p281) target = $region24
        $region23: #{tpu_custom_call.1} parent=11 // pred_region
          _
        $region24: #{tpu_custom_call.1} parent=11 // pred_fallthru
          _
        // Predicated region
        $region25: #{tpu_custom_call.1} parent=11 // pred_check
          %p284 = pneg %p129
        $region26: #{tpu_custom_call.1} parent=11 // pred_check_branch
          %286 = sbr.rel (%p284) target = $region28
        $region27: #{tpu_custom_call.1} parent=11 // pred_region
          _
        $region28: #{tpu_custom_call.1} parent=11 // pred_fallthru
          _
        // Predicated region
        $region29: #{tpu_custom_call.1} parent=11 // pred_check
          %p287 = pneg %p150
        $region30: #{tpu_custom_call.1} parent=11 // pred_check_branch
          %289 = sbr.rel (%p287) target = $region32
        $region31: #{tpu_custom_call.1} parent=11 // pred_region
          _
        $region32: #{tpu_custom_call.1} parent=11 // pred_fallthru
          _
        // Predicated region
        $region33: #{tpu_custom_call.1} parent=11 // pred_check
          %p290 = pneg %p171
        $region34: #{tpu_custom_call.1} parent=11 // pred_check_branch
          %292 = sbr.rel (%p290) target = $region36
        $region35: #{tpu_custom_call.1} parent=11 // pred_region
          _
        $region36: #{tpu_custom_call.1} parent=11 // pred_fallthru
          _
        // Predicated region
        $region37: #{tpu_custom_call.1} parent=11 // pred_check
          %p293 = pneg %p192
        $region38: #{tpu_custom_call.1} parent=11 // pred_check_branch
          %295 = sbr.rel (%p293) target = $region40
        $region39: #{tpu_custom_call.1} parent=11 // pred_region
          _
        $region40: #{tpu_custom_call.1} parent=11 // pred_fallthru
          _
        // Predicated region
        $region41: #{tpu_custom_call.1} parent=11 // pred_check
          %p296 = pneg %p213
        $region42: #{tpu_custom_call.1} parent=11 // pred_check_branch
          %298 = sbr.rel (%p296) target = $region44
        $region43: #{tpu_custom_call.1} parent=11 // pred_region
          _
        $region44: #{tpu_custom_call.1} parent=11 // pred_fallthru
          _
        // Predicated region
        $region45: #{tpu_custom_call.1} parent=11 // pred_check
          %p299 = pneg %p234
        $region46: #{tpu_custom_call.1} parent=11 // pred_check_branch
          %301 = sbr.rel (%p299) target = $region48
        $region47: #{tpu_custom_call.1} parent=11 // pred_region
          _
        $region48: #{tpu_custom_call.1} parent=11 // pred_fallthru
          _
      $region12: #{tpu_custom_call.1} parent=5 // pred_fallthru
        _
      %p302 = scmp.lt.s32.totalorder %s19, 2
      // Predicated region
      $region49: #{tpu_custom_call.1} parent=5 // pred_check
        %p303 = pneg %p302
      $region50: #{tpu_custom_call.1} parent=5 // pred_check_branch
        %305 = sbr.rel (%p303) target = $region52
      $region51: #{tpu_custom_call.1} parent=5 // pred_region
        // Predicated region
        $region53: #{tpu_custom_call.1} parent=51 // pred_check
          %p306 = pneg %p39
        $region54: #{tpu_custom_call.1} parent=51 // pred_check_branch
          %308 = sbr.rel (%p306) target = $region56
        $region55: #{tpu_custom_call.1} parent=51 // pred_region
          %p309 = scmp.lt.s32.totalorder %s19, 1
          %s310 = scalar_select %p309, %s19, 1
          %s311 = smul.addr %s310, 4
          %s312 = smul.addr %s311, 8
          %s313 = scalar_lea.vmem %s0, %s312
        $region56: #{tpu_custom_call.1} parent=51 // pred_fallthru
          _
      $region52: #{tpu_custom_call.1} parent=5 // pred_fallthru
        _
      %p314 = scmp.le.s32.totalorder 1, %s19
      %p315 = scmp.lt.s32.totalorder %s19, 3
      %p316 = pnand %p314, %p315
      %p317 = pneg %p316
      // Predicated region
      $region57: #{tpu_custom_call.1} parent=5 // pred_check
        _
      $region58: #{tpu_custom_call.1} parent=5 // pred_check_branch
        %319 = sbr.rel (%p316) target = $region60
      $region59: #{tpu_custom_call.1} parent=5 // pred_region
        %s320 = ssub.s32 %s19, 1
        %p321 = scmp.lt.s32.totalorder %s24, 1
        %s322 = scalar_select %p321, %s24, 1
        %s323 = smul.addr %s322, 4
        %s324 = smul.addr %s323, 8
        %s325 = scalar_lea.vmem %s0, %s324
        %p326 = pneg %p45
        %p327 = pneg %p42
        %p328 = pneg %p66
        %p329 = pneg %p63
        %p330 = pneg %p87
        %p331 = pneg %p84
        %p332 = pneg %p108
        %p333 = pneg %p105
        %p334 = pneg %p129
        %p335 = pneg %p126
        %p336 = pneg %p150
        %p337 = pneg %p147
        %p338 = pneg %p171
        %p339 = pneg %p168
        %p340 = pneg %p192
        %p341 = pneg %p189
        %p342 = pneg %p213
        %p343 = pneg %p210
        %p344 = pneg %p234
        %p345 = pneg %p231
        %p346 = pneg %p260
        %p347 = pneg %p257
        %s348 = sand.u32 %s247, 1
        %s349 = scalar_lea.sflag [#allocation4], %s348
        %s350 = sand.u32 %s247, 1
        %s351 = smul.addr %s350, 8
        %s352 = scalar_lea.vmem [#allocation3], %s351
        %p353 = scmp.lt.s32.totalorder %s24, 1
        %s354 = scalar_select %p353, %s24, 1
        %s355 = smul.addr %s354, 4
        %s356 = smul.addr %s355, 8
        %s357 = scalar_lea.vmem %s0, %s356
        %vm358 = vcmask 15360
        %359 = vst.msk [vmem:[#allocation2] sm:$0xff] %vm358, 0.0
        %360 = vst.msk [vmem:[#allocation2 + $0x8] sm:$0xff] %vm358, 0.0
        %361 = vst.msk [vmem:[#allocation2 + $0x10] sm:$0xff] %vm358, 0.0
        %362 = vst.msk [vmem:[#allocation2 + $0x18] sm:$0xff] %vm358, 0.0
        %vm363 = vcmask 195728
        %364 = vst.msk [vmem:[#allocation2] sm:$0xff] %vm363, 0.0
        %365 = vst.msk [vmem:[#allocation2 + $0x8] sm:$0xff] %vm363, 0.0
        %366 = vst.msk [vmem:[#allocation2 + $0x10] sm:$0xff] %vm363, 0.0
        %367 = vst.msk [vmem:[#allocation2 + $0x18] sm:$0xff] %vm363, 0.0
        %v368 = vld [vmem:[%s357] sm:$0xff]
        %v369 = vld [vmem:[%s357 + $0x8] sm:$0xff]
        %v370 = vld [vmem:[%s357 + $0x10] sm:$0xff]
        %v371 = vld [vmem:[%s357 + $0x18] sm:$0xff]
        %376 = vrot.lane.b32.xlu0 %v368, 2
        %v377 = vpop.permute.xlu0 %376
        %378 = vrot.lane.b32.xlu0 %v369, 2
        %v379 = vpop.permute.xlu0 %378
        %380 = vrot.lane.b32.xlu0 %v370, 2
        %v381 = vpop.permute.xlu0 %380
        %382 = vrot.lane.b32.xlu0 %v371, 2
        %v383 = vpop.permute.xlu0 %382
        %vm388 = vcmask 146448
        %389 = vst.msk [vmem:[#allocation2] sm:$0xff] %vm388, %v377
        %390 = vst.msk [vmem:[#allocation2 + $0x8] sm:$0xff] %vm388, %v379
        %391 = vst.msk [vmem:[#allocation2 + $0x10] sm:$0xff] %vm388, %v381
        %392 = vst.msk [vmem:[#allocation2 + $0x18] sm:$0xff] %vm388, %v383
        %v393 = vld [vmem:[#allocation2] sm:$0xff]
        %v394 = vld [vmem:[#allocation2 + $0x8] sm:$0xff]
        %v395 = vld [vmem:[#allocation2 + $0x10] sm:$0xff]
        %v396 = vld [vmem:[#allocation2 + $0x18] sm:$0xff]
        %401 = vrot.lane.b32.xlu0 %v393, 127
        %v402 = vpop.permute.xlu0 %401
        %403 = vrot.lane.b32.xlu0 %v394, 127
        %v404 = vpop.permute.xlu0 %403
        %405 = vrot.lane.b32.xlu0 %v395, 127
        %v406 = vpop.permute.xlu0 %405
        %407 = vrot.lane.b32.xlu0 %v396, 127
        %v408 = vpop.permute.xlu0 %407
        %413 = vrot.lane.b32.xlu0 %v393, 126
        %v414 = vpop.permute.xlu0 %413
        %415 = vrot.lane.b32.xlu0 %v394, 126
        %v416 = vpop.permute.xlu0 %415
        %417 = vrot.lane.b32.xlu0 %v395, 126
        %v418 = vpop.permute.xlu0 %417
        %419 = vrot.lane.b32.xlu0 %v396, 126
        %v420 = vpop.permute.xlu0 %419
        %425 = vrot.lane.b32.xlu0 %v393, 125
        %v426 = vpop.permute.xlu0 %425
        %427 = vrot.lane.b32.xlu0 %v394, 125
        %v428 = vpop.permute.xlu0 %427
        %429 = vrot.lane.b32.xlu0 %v395, 125
        %v430 = vpop.permute.xlu0 %429
        %431 = vrot.lane.b32.xlu0 %v396, 125
        %v432 = vpop.permute.xlu0 %431
        %437 = vrot.lane.b32.xlu0 %v393, 124
        %v438 = vpop.permute.xlu0 %437
        %439 = vrot.lane.b32.xlu0 %v394, 124
        %v440 = vpop.permute.xlu0 %439
        %441 = vrot.lane.b32.xlu0 %v395, 124
        %v442 = vpop.permute.xlu0 %441
        %443 = vrot.lane.b32.xlu0 %v396, 124
        %v444 = vpop.permute.xlu0 %443
        %v449 = vld [vmem:[%s1] sm:$0xff]
        %v450 = vld [vmem:[%s1 + $0x8] sm:$0xff]
        %v451 = vld [vmem:[%s1 + $0x10] sm:$0xff]
        %v452 = vld [vmem:[%s1 + $0x18] sm:$0xff]
        %v453 = vld [vmem:[%s1 + $0x20] sm:$0xff]
        %v454 = vld [vmem:[%s1 + $0x28] sm:$0xff]
        %v455 = vld [vmem:[%s1 + $0x30] sm:$0xff]
        %v456 = vld [vmem:[%s1 + $0x38] sm:$0xff]
        %v457 = vld [vmem:[%s2] sm:$0xff]
        %v458 = vld [vmem:[%s2 + $0x8] sm:$0xff]
        %v459 = vld [vmem:[%s2 + $0x10] sm:$0xff]
        %v460 = vld [vmem:[%s2 + $0x18] sm:$0xff]
        %462 = vset.pattern.permute.xlu0 0
        %463 = vperm.xlu0 %462, %v457
        %v464 = vpop.permute.xlu0 %463
        %467 = vset.pattern.permute.xlu0 0
        %468 = vperm.xlu0 %467, %v458
        %v469 = vpop.permute.xlu0 %468
        %472 = vset.pattern.permute.xlu0 0
        %473 = vperm.xlu0 %472, %v459
        %v474 = vpop.permute.xlu0 %473
        %477 = vset.pattern.permute.xlu0 0
        %478 = vperm.xlu0 %477, %v460
        %v479 = vpop.permute.xlu0 %478
        %vm481 = vcmask 261120
        %v483 = vsel %vm481, %v450, 0
        %v486 = vsel %vm481, %v452, 0
        %v489 = vsel %vm481, %v454, 0
        %v492 = vsel %vm481, %v456, 0
        %494 = vmatprep.subr.mxu0 0.0
        %495 = vmatpush1.msra.mxu0 %v432
        %496 = vmatprep.subr.mxu0 0.0
        %497 = vmatpush1.msra.mxu0 %v430
        %498 = vmatprep.subr.mxu0 0.0
        %499 = vmatpush1.msra.mxu0 %v428
        %500 = vmatprep.subr.mxu0 0.0
        %501 = vmatpush1.msra.mxu0 %v426
        %502 = vmatprep.subr.mxu0 0.0
        %503 = vmatpush1.msra.mxu0 %v420
        %504 = vmatprep.subr.mxu0 0.0
        %505 = vmatpush1.msra.mxu0 %v418
        %506 = vmatprep.subr.mxu0 0.0
        %507 = vmatpush1.msra.mxu0 %v416
        %508 = vmatprep.subr.mxu0 0.0
        %509 = vmatpush1.msra.mxu0 %v414
        %510 = vmatprep.subr.mxu0 0.0
        %511 = vmatpush1.msra.mxu0 %v408
        %512 = vmatprep.subr.mxu0 0.0
        %513 = vmatpush1.msra.mxu0 %v406
        %514 = vmatprep.subr.mxu0 0.0
        %515 = vmatpush1.msra.mxu0 %v404
        %516 = vmatprep.subr.mxu0 0.0
        %517 = vmatpush1.msra.mxu0 %v402
        %518 = vmatprep.subr.mxu0 0.0
        %519 = vmatpush1.msra.mxu0 %v396
        %520 = vmatprep.subr.mxu0 0.0
        %521 = vmatpush1.msra.mxu0 %v395
        %522 = vmatprep.subr.mxu0 0.0
        %523 = vmatpush1.msra.mxu0 %v394
        %524 = vmatprep.subr.mxu0 0.0
        %525 = vmatpush1.msra.mxu0 %v393
        %526 = vmatprep.subr.mxu0 0.0
        %527 = vmatpush2.msra.mxu0 0.0
        %528 = vmatprep.subr.mxu0 0.0
        %529 = vmatpush2.msra.mxu0 0.0
        %530 = vmatprep.subr.mxu0 0.0
        %531 = vmatpush2.msra.mxu0 0.0
        %532 = vmatprep.subr.mxu0 0.0
        %533 = vmatpush2.msra.mxu0 0.0
        %534 = vmatprep.subr.mxu0 0.0
        %535 = vmatpush2.msra.mxu0 0.0
        %536 = vmatprep.subr.mxu0 0.0
        %537 = vmatpush2.msra.mxu0 0.0
        %538 = vmatprep.subr.mxu0 0.0
        %539 = vmatpush2.msra.mxu0 0.0
        %540 = vmatprep.subr.mxu0 0.0
        %541 = vmatpush2.msra.mxu0 0.0
        %542 = vmatprep.subr.mxu0 0.0
        %543 = vmatpush2.msra.mxu0 0.0
        %544 = vmatprep.subr.mxu0 0.0
        %545 = vmatpush2.msra.mxu0 0.0
        %546 = vmatprep.subr.mxu0 0.0
        %547 = vmatpush2.msra.mxu0 0.0
        %548 = vmatprep.subr.mxu0 0.0
        %549 = vmatpush2.msra.mxu0 0.0
        %550 = vmatprep.subr.mxu0 0.0
        %551 = vmatpush2.msra.mxu0 %v444
        %552 = vmatprep.subr.mxu0 0.0
        %553 = vmatpush2.msra.mxu0 %v442
        %554 = vmatprep.subr.mxu0 0.0
        %555 = vmatpush2.msra.mxu0 %v440
        %556 = vmatprep.subr.mxu0 0.0
        %557 = vmatpush2.msra.mxu0 %v438
        %558 = vmatprep.mubr.f32.mxu0 %v483
        %559 = vmatmul.mubr.f32.gmra.mxu0 %v449
        %v560 = vpop.f32.mrf.mxu0
        %v561 = vadd.f32 %v464, %v560
        %v562 = vpop.f32.mrf.mxu0
        %563 = vmatprep.mubr.f32.mxu0 %v486
        %564 = vmatmul.mubr.f32.gmra.mxu0 %v451
        %v565 = vpop.f32.mrf.mxu0
        %v566 = vadd.f32 %v469, %v565
        %v567 = vpop.f32.mrf.mxu0
        %568 = vmatprep.mubr.f32.mxu0 %v489
        %569 = vmatmul.mubr.f32.gmra.mxu0 %v453
        %v570 = vpop.f32.mrf.mxu0
        %v571 = vadd.f32 %v474, %v570
        %v572 = vpop.f32.mrf.mxu0
        %573 = vmatprep.mubr.f32.mxu0 %v492
        %574 = vmatmul.mubr.f32.gmra.mxu0 %v455
        %v575 = vpop.f32.mrf.mxu0
        %v576 = vadd.f32 %v479, %v575
        %v577 = vpop.f32.mrf.mxu0
        %578 = vdwg.mxu0
        %v579 = vld [vmem:[%s6] sm:$0xff]
        %v580 = vld [vmem:[%s6 + $0x8] sm:$0xff]
        %v581 = vld [vmem:[%s6 + $0x10] sm:$0xf]
        %vm582 = vcmask 162816
        %v584 = vsel %vm582, %v561, 0
        %v587 = vsel %vm582, %v566, 0
        %v590 = vsel %vm582, %v571, 0
        %v593 = vsel %vm582, %v576, 0
        %vm595 = vcmask 1043456
        %v597 = vsel %vm595, %v581, 0
        %599 = vmatprep.subr.mxu0 0.0
        %600 = vmatpush1.msra.mxu0 0.0
        %601 = vmatprep.subr.mxu0 0.0
        %602 = vmatpush1.msra.mxu0 0.0
        %603 = vmatprep.subr.mxu0 0.0
        %604 = vmatpush1.msra.mxu0 0.0
        %605 = vmatprep.subr.mxu0 0.0
        %606 = vmatpush1.msra.mxu0 0.0
        %607 = vmatprep.subr.mxu0 0.0
        %608 = vmatpush1.msra.mxu0 0.0
        %609 = vmatprep.subr.mxu0 0.0
        %610 = vmatpush1.msra.mxu0 0.0
        %611 = vmatprep.subr.mxu0 0.0
        %612 = vmatpush1.msra.mxu0 0.0
        %613 = vmatprep.subr.mxu0 0.0
        %614 = vmatpush1.msra.mxu0 0.0
        %615 = vmatprep.subr.mxu0 0.0
        %616 = vmatpush1.msra.mxu0 0.0
        %617 = vmatprep.subr.mxu0 0.0
        %618 = vmatpush1.msra.mxu0 0.0
        %619 = vmatprep.subr.mxu0 0.0
        %620 = vmatpush1.msra.mxu0 0.0
        %621 = vmatprep.subr.mxu0 0.0
        %622 = vmatpush1.msra.mxu0 0.0
        %623 = vmatprep.subr.mxu0 0.0
        %624 = vmatpush1.msra.mxu0 0.0
        %625 = vmatprep.subr.mxu0 0.0
        %626 = vmatpush1.msra.mxu0 %v597
        %627 = vmatprep.subr.mxu0 0.0
        %628 = vmatpush1.msra.mxu0 %v580
        %629 = vmatprep.subr.mxu0 0.0
        %630 = vmatpush1.msra.mxu0 %v579
        %631 = vmatprep.subr.mxu0 0.0
        %632 = vmatpush2.msra.mxu0 0.0
        %633 = vmatprep.subr.mxu0 0.0
        %634 = vmatpush2.msra.mxu0 0.0
        %635 = vmatprep.subr.mxu0 0.0
        %636 = vmatpush2.msra.mxu0 0.0
        %637 = vmatprep.subr.mxu0 0.0
        %638 = vmatpush2.msra.mxu0 0.0
        %639 = vmatprep.subr.mxu0 0.0
        %640 = vmatpush2.msra.mxu0 0.0
        %641 = vmatprep.subr.mxu0 0.0
        %642 = vmatpush2.msra.mxu0 0.0
        %643 = vmatprep.subr.mxu0 0.0
        %644 = vmatpush2.msra.mxu0 0.0
        %645 = vmatprep.subr.mxu0 0.0
        %646 = vmatpush2.msra.mxu0 0.0
        %647 = vmatprep.subr.mxu0 0.0
        %648 = vmatpush2.msra.mxu0 0.0
        %649 = vmatprep.subr.mxu0 0.0
        %650 = vmatpush2.msra.mxu0 0.0
        %651 = vmatprep.subr.mxu0 0.0
        %652 = vmatpush2.msra.mxu0 0.0
        %653 = vmatprep.subr.mxu0 0.0
        %654 = vmatpush2.msra.mxu0 0.0
        %655 = vmatprep.subr.mxu0 0.0
        %656 = vmatpush2.msra.mxu0 0.0
        %657 = vmatprep.subr.mxu0 0.0
        %658 = vmatpush2.msra.mxu0 0.0
        %659 = vmatprep.subr.mxu0 0.0
        %660 = vmatpush2.msra.mxu0 0.0
        %661 = vmatprep.subr.mxu0 0.0
        %662 = vmatpush2.msra.mxu0 0.0
        %663 = vmatprep.mubr.f32.mxu0 0.0
        %664 = vmatmul.mubr.f32.gmra.mxu0 %v584
        %v665 = vpop.f32.mrf.mxu0
        %v666 = vadd.f32 0.0, %v665
        %v667 = vpop.f32.mrf.mxu0
        %668 = vmatprep.mubr.f32.mxu0 0.0
        %669 = vmatmul.mubr.f32.gmra.mxu0 %v587
        %v670 = vpop.f32.mrf.mxu0
        %v671 = vadd.f32 0.0, %v670
        %v672 = vpop.f32.mrf.mxu0
        %673 = vmatprep.mubr.f32.mxu0 0.0
        %674 = vmatmul.mubr.f32.gmra.mxu0 %v590
        %v675 = vpop.f32.mrf.mxu0
        %v676 = vadd.f32 0.0, %v675
        %v677 = vpop.f32.mrf.mxu0
        %678 = vmatprep.mubr.f32.mxu0 0.0
        %679 = vmatmul.mubr.f32.gmra.mxu0 %v593
        %v680 = vpop.f32.mrf.mxu0
        %v681 = vadd.f32 0.0, %v680
        %v682 = vpop.f32.mrf.mxu0
        %683 = vdwg.mxu0
        %v684 = vmul.f32 %v561, %v561
        %v685 = vmul.f32 %v566, %v566
        %v686 = vmul.f32 %v571, %v571
        %v687 = vmul.f32 %v576, %v576
        %v689 = vsel %vm582, %v684, 0
        %v692 = vsel %vm582, %v685, 0
        %v695 = vsel %vm582, %v686, 0
        %v698 = vsel %vm582, %v687, 0
        %700 = vmatprep.subr.mxu0 0.0
        %701 = vmatpush1.msra.mxu0 0.0
        %702 = vmatprep.subr.mxu0 0.0
        %703 = vmatpush1.msra.mxu0 0.0
        %704 = vmatprep.subr.mxu0 0.0
        %705 = vmatpush1.msra.mxu0 0.0
        %706 = vmatprep.subr.mxu0 0.0
        %707 = vmatpush1.msra.mxu0 0.0
        %708 = vmatprep.subr.mxu0 0.0
        %709 = vmatpush1.msra.mxu0 0.0
        %710 = vmatprep.subr.mxu0 0.0
        %711 = vmatpush1.msra.mxu0 0.0
        %712 = vmatprep.subr.mxu0 0.0
        %713 = vmatpush1.msra.mxu0 0.0
        %714 = vmatprep.subr.mxu0 0.0
        %715 = vmatpush1.msra.mxu0 0.0
        %716 = vmatprep.subr.mxu0 0.0
        %717 = vmatpush1.msra.mxu0 0.0
        %718 = vmatprep.subr.mxu0 0.0
        %719 = vmatpush1.msra.mxu0 0.0
        %720 = vmatprep.subr.mxu0 0.0
        %721 = vmatpush1.msra.mxu0 0.0
        %722 = vmatprep.subr.mxu0 0.0
        %723 = vmatpush1.msra.mxu0 0.0
        %724 = vmatprep.subr.mxu0 0.0
        %725 = vmatpush1.msra.mxu0 0.0
        %726 = vmatprep.subr.mxu0 0.0
        %727 = vmatpush1.msra.mxu0 %v597
        %728 = vmatprep.subr.mxu0 0.0
        %729 = vmatpush1.msra.mxu0 %v580
        %730 = vmatprep.subr.mxu0 0.0
        %731 = vmatpush1.msra.mxu0 %v579
        %732 = vmatprep.subr.mxu0 0.0
        %733 = vmatpush2.msra.mxu0 0.0
        %734 = vmatprep.subr.mxu0 0.0
        %735 = vmatpush2.msra.mxu0 0.0
        %736 = vmatprep.subr.mxu0 0.0
        %737 = vmatpush2.msra.mxu0 0.0
        %738 = vmatprep.subr.mxu0 0.0
        %739 = vmatpush2.msra.mxu0 0.0
        %740 = vmatprep.subr.mxu0 0.0
        %741 = vmatpush2.msra.mxu0 0.0
        %742 = vmatprep.subr.mxu0 0.0
        %743 = vmatpush2.msra.mxu0 0.0
        %744 = vmatprep.subr.mxu0 0.0
        %745 = vmatpush2.msra.mxu0 0.0
        %746 = vmatprep.subr.mxu0 0.0
        %747 = vmatpush2.msra.mxu0 0.0
        %748 = vmatprep.subr.mxu0 0.0
        %749 = vmatpush2.msra.mxu0 0.0
        %750 = vmatprep.subr.mxu0 0.0
        %751 = vmatpush2.msra.mxu0 0.0
        %752 = vmatprep.subr.mxu0 0.0
        %753 = vmatpush2.msra.mxu0 0.0
        %754 = vmatprep.subr.mxu0 0.0
        %755 = vmatpush2.msra.mxu0 0.0
        %756 = vmatprep.subr.mxu0 0.0
        %757 = vmatpush2.msra.mxu0 0.0
        %758 = vmatprep.subr.mxu0 0.0
        %759 = vmatpush2.msra.mxu0 0.0
        %760 = vmatprep.subr.mxu0 0.0
        %761 = vmatpush2.msra.mxu0 0.0
        %762 = vmatprep.subr.mxu0 0.0
        %763 = vmatpush2.msra.mxu0 0.0
        %764 = vmatprep.mubr.f32.mxu0 0.0
        %765 = vmatmul.mubr.f32.gmra.mxu0 %v689
        %v766 = vpop.f32.mrf.mxu0
        %v767 = vadd.f32 0.0, %v766
        %v768 = vpop.f32.mrf.mxu0
        %769 = vmatprep.mubr.f32.mxu0 0.0
        %770 = vmatmul.mubr.f32.gmra.mxu0 %v692
        %v771 = vpop.f32.mrf.mxu0
        %v772 = vadd.f32 0.0, %v771
        %v773 = vpop.f32.mrf.mxu0
        %774 = vmatprep.mubr.f32.mxu0 0.0
        %775 = vmatmul.mubr.f32.gmra.mxu0 %v695
        %v776 = vpop.f32.mrf.mxu0
        %v777 = vadd.f32 0.0, %v776
        %v778 = vpop.f32.mrf.mxu0
        %779 = vmatprep.mubr.f32.mxu0 0.0
        %780 = vmatmul.mubr.f32.gmra.mxu0 %v698
        %v781 = vpop.f32.mrf.mxu0
        %v782 = vadd.f32 0.0, %v781
        %v783 = vpop.f32.mrf.mxu0
        %784 = vdwg.mxu0
        %v785 = vld [vmem:[%s5] sm:$0xff]
        %v786 = vld [vmem:[%s5 + $0x8] sm:$0xff]
        %v787 = vld [vmem:[%s5 + $0x10] sm:$0xff]
        %v788 = vld [vmem:[%s5 + $0x18] sm:$0xff]
        %793 = vrot.lane.b32.xlu0 %v767, 1
        %v794 = vpop.permute.xlu0 %793
        %795 = vrot.lane.b32.xlu0 %v772, 1
        %v796 = vpop.permute.xlu0 %795
        %797 = vrot.lane.b32.xlu0 %v777, 1
        %v798 = vpop.permute.xlu0 %797
        %799 = vrot.lane.b32.xlu0 %v782, 1
        %v800 = vpop.permute.xlu0 %799
        %vm805 = vcmask 7168
        %v806 = vsel %vm805, %v666, %v794
        %v807 = vsel %vm805, %v671, %v796
        %v808 = vsel %vm805, %v676, %v798
        %v809 = vsel %vm805, %v681, %v800
        %v811 = vsel %vm481, %v785, 0
        %v814 = vsel %vm481, %v786, 0
        %v817 = vsel %vm481, %v787, 0
        %v820 = vsel %vm481, %v788, 0
        %822 = vmatprep.subr.mxu0 0.0
        %823 = vmatpush1.msra.mxu0 0.0
        %824 = vmatprep.subr.mxu0 0.0
        %825 = vmatpush1.msra.mxu0 0.0
        %826 = vmatprep.subr.mxu0 0.0
        %827 = vmatpush1.msra.mxu0 0.0
        %828 = vmatprep.subr.mxu0 0.0
        %829 = vmatpush1.msra.mxu0 0.0
        %830 = vmatprep.subr.mxu0 0.0
        %831 = vmatpush1.msra.mxu0 0.0
        %832 = vmatprep.subr.mxu0 0.0
        %833 = vmatpush1.msra.mxu0 0.0
        %834 = vmatprep.subr.mxu0 0.0
        %835 = vmatpush1.msra.mxu0 0.0
        %836 = vmatprep.subr.mxu0 0.0
        %837 = vmatpush1.msra.mxu0 0.0
        %838 = vmatprep.subr.mxu0 0.0
        %839 = vmatpush1.msra.mxu0 0.0
        %840 = vmatprep.subr.mxu0 0.0
        %841 = vmatpush1.msra.mxu0 0.0
        %842 = vmatprep.subr.mxu0 0.0
        %843 = vmatpush1.msra.mxu0 0.0
        %844 = vmatprep.subr.mxu0 0.0
        %845 = vmatpush1.msra.mxu0 0.0
        %846 = vmatprep.subr.mxu0 0.0
        %847 = vmatpush1.msra.mxu0 %v809
        %848 = vmatprep.subr.mxu0 0.0
        %849 = vmatpush1.msra.mxu0 %v808
        %850 = vmatprep.subr.mxu0 0.0
        %851 = vmatpush1.msra.mxu0 %v807
        %852 = vmatprep.subr.mxu0 0.0
        %853 = vmatpush1.msra.mxu0 %v806
        %854 = vmatprep.subr.mxu0 0.0
        %855 = vmatpush2.msra.mxu0 0.0
        %856 = vmatprep.subr.mxu0 0.0
        %857 = vmatpush2.msra.mxu0 0.0
        %858 = vmatprep.subr.mxu0 0.0
        %859 = vmatpush2.msra.mxu0 0.0
        %860 = vmatprep.subr.mxu0 0.0
        %861 = vmatpush2.msra.mxu0 0.0
        %862 = vmatprep.subr.mxu0 0.0
        %863 = vmatpush2.msra.mxu0 0.0
        %864 = vmatprep.subr.mxu0 0.0
        %865 = vmatpush2.msra.mxu0 0.0
        %866 = vmatprep.subr.mxu0 0.0
        %867 = vmatpush2.msra.mxu0 0.0
        %868 = vmatprep.subr.mxu0 0.0
        %869 = vmatpush2.msra.mxu0 0.0
        %870 = vmatprep.subr.mxu0 0.0
        %871 = vmatpush2.msra.mxu0 0.0
        %872 = vmatprep.subr.mxu0 0.0
        %873 = vmatpush2.msra.mxu0 0.0
        %874 = vmatprep.subr.mxu0 0.0
        %875 = vmatpush2.msra.mxu0 0.0
        %876 = vmatprep.subr.mxu0 0.0
        %877 = vmatpush2.msra.mxu0 0.0
        %878 = vmatprep.subr.mxu0 0.0
        %879 = vmatpush2.msra.mxu0 0.0
        %880 = vmatprep.subr.mxu0 0.0
        %881 = vmatpush2.msra.mxu0 0.0
        %882 = vmatprep.subr.mxu0 0.0
        %883 = vmatpush2.msra.mxu0 0.0
        %884 = vmatprep.subr.mxu0 0.0
        %885 = vmatpush2.msra.mxu0 0.0
        %886 = vmatprep.mubr.f32.mxu0 0.0
        %887 = vmatmul.mubr.f32.gmra.mxu0 %v811
        %v888 = vpop.f32.mrf.mxu0
        %v889 = vadd.f32 0.0, %v888
        %v890 = vpop.f32.mrf.mxu0
        %891 = vmatprep.mubr.f32.mxu0 0.0
        %892 = vmatmul.mubr.f32.gmra.mxu0 %v814
        %v893 = vpop.f32.mrf.mxu0
        %v894 = vadd.f32 0.0, %v893
        %v895 = vpop.f32.mrf.mxu0
        %896 = vmatprep.mubr.f32.mxu0 0.0
        %897 = vmatmul.mubr.f32.gmra.mxu0 %v817
        %v898 = vpop.f32.mrf.mxu0
        %v899 = vadd.f32 0.0, %v898
        %v900 = vpop.f32.mrf.mxu0
        %901 = vmatprep.mubr.f32.mxu0 0.0
        %902 = vmatmul.mubr.f32.gmra.mxu0 %v820
        %v903 = vpop.f32.mrf.mxu0
        %v904 = vadd.f32 0.0, %v903
        %v905 = vpop.f32.mrf.mxu0
        %906 = vdwg.mxu0
        %v907 = vmul.f32 %v889, %v889
        %v908 = vmul.f32 %v894, %v894
        %v909 = vmul.f32 %v899, %v899
        %v910 = vmul.f32 %v904, %v904
        %915 = vrot.lane.b32.xlu0 %v907, 1
        %v916 = vpop.permute.xlu0 %915
        %917 = vrot.lane.b32.xlu0 %v908, 1
        %v918 = vpop.permute.xlu0 %917
        %919 = vrot.lane.b32.xlu0 %v909, 1
        %v920 = vpop.permute.xlu0 %919
        %921 = vrot.lane.b32.xlu0 %v910, 1
        %v922 = vpop.permute.xlu0 %921
        %v927 = vsub.f32 %v889, %v916
        %v928 = vsub.f32 %v894, %v918
        %v929 = vsub.f32 %v899, %v920
        %v930 = vsub.f32 %v904, %v922
        %v931 = vadd.f32 %v927, 1e-05
        %v932 = vadd.f32 %v928, 1e-05
        %v933 = vadd.f32 %v929, 1e-05
        %v934 = vadd.f32 %v930, 1e-05
        %v935 = vrsqrt.pop %v931
        %v936 = vrsqrt.pop %v932
        %v937 = vrsqrt.pop %v933
        %v938 = vrsqrt.pop %v934
        %v939 = vld [vmem:[%s3] sm:$0xff]
        %v940 = vld [vmem:[%s3 + $0x8] sm:$0xff]
        %v941 = vld [vmem:[%s3 + $0x10] sm:$0xff]
        %v942 = vld [vmem:[%s3 + $0x18] sm:$0xff]
        %947 = vrot.lane.b32.xlu0 %v935, 127
        %v948 = vpop.permute.xlu0 %947
        %949 = vrot.lane.b32.xlu0 %v936, 127
        %v950 = vpop.permute.xlu0 %949
        %951 = vrot.lane.b32.xlu0 %v937, 127
        %v952 = vpop.permute.xlu0 %951
        %953 = vrot.lane.b32.xlu0 %v938, 127
        %v954 = vpop.permute.xlu0 %953
        %v959 = vmul.f32 %v939, %v948
        %v960 = vmul.f32 %v940, %v950
        %v961 = vmul.f32 %v941, %v952
        %v962 = vmul.f32 %v942, %v954
        %v963 = vld [vmem:[%s4] sm:$0xff]
        %v964 = vld [vmem:[%s4 + $0x8] sm:$0xff]
        %v965 = vld [vmem:[%s4 + $0x10] sm:$0xff]
        %v966 = vld [vmem:[%s4 + $0x18] sm:$0xff]
        %v967 = vmul.f32 %v889, %v959
        %v968 = vmul.f32 %v894, %v960
        %v969 = vmul.f32 %v899, %v961
        %v970 = vmul.f32 %v904, %v962
        %v971 = vsub.f32 %v963, %v967
        %v972 = vsub.f32 %v964, %v968
        %v973 = vsub.f32 %v965, %v969
        %v974 = vsub.f32 %v966, %v970
        %v975 = vld [vmem:[%s7] sm:$0x1]
        %v977 = vsel %vm805, %v959, 0
        %v980 = vsel %vm805, %v960, 0
        %v983 = vsel %vm805, %v961, 0
        %v986 = vsel %vm805, %v962, 0
        %vm988 = vcmask 1040384
        %v990 = vsel %vm988, %v975, 0
        %992 = vmatprep.subr.mxu0 0.0
        %993 = vmatpush1.msra.mxu0 0.0
        %994 = vmatprep.subr.mxu0 0.0
        %995 = vmatpush1.msra.mxu0 0.0
        %996 = vmatprep.subr.mxu0 0.0
        %997 = vmatpush1.msra.mxu0 0.0
        %998 = vmatprep.subr.mxu0 0.0
        %999 = vmatpush1.msra.mxu0 0.0
        %1000 = vmatprep.subr.mxu0 0.0
        %1001 = vmatpush1.msra.mxu0 0.0
        %1002 = vmatprep.subr.mxu0 0.0
        %1003 = vmatpush1.msra.mxu0 0.0
        %1004 = vmatprep.subr.mxu0 0.0
        %1005 = vmatpush1.msra.mxu0 0.0
        %1006 = vmatprep.subr.mxu0 0.0
        %1007 = vmatpush1.msra.mxu0 0.0
        %1008 = vmatprep.subr.mxu0 0.0
        %1009 = vmatpush1.msra.mxu0 0.0
        %1010 = vmatprep.subr.mxu0 0.0
        %1011 = vmatpush1.msra.mxu0 0.0
        %1012 = vmatprep.subr.mxu0 0.0
        %1013 = vmatpush1.msra.mxu0 0.0
        %1014 = vmatprep.subr.mxu0 0.0
        %1015 = vmatpush1.msra.mxu0 0.0
        %1016 = vmatprep.subr.mxu0 0.0
        %1017 = vmatpush1.msra.mxu0 0.0
        %1018 = vmatprep.subr.mxu0 0.0
        %1019 = vmatpush1.msra.mxu0 0.0
        %1020 = vmatprep.subr.mxu0 0.0
        %1021 = vmatpush1.msra.mxu0 0.0
        %1022 = vmatprep.subr.mxu0 0.0
        %1023 = vmatpush1.msra.mxu0 %v990
        %1024 = vmatprep.subr.mxu0 0.0
        %1025 = vmatpush2.msra.mxu0 0.0
        %1026 = vmatprep.subr.mxu0 0.0
        %1027 = vmatpush2.msra.mxu0 0.0
        %1028 = vmatprep.subr.mxu0 0.0
        %1029 = vmatpush2.msra.mxu0 0.0
        %1030 = vmatprep.subr.mxu0 0.0
        %1031 = vmatpush2.msra.mxu0 0.0
        %1032 = vmatprep.subr.mxu0 0.0
        %1033 = vmatpush2.msra.mxu0 0.0
        %1034 = vmatprep.subr.mxu0 0.0
        %1035 = vmatpush2.msra.mxu0 0.0
        %1036 = vmatprep.subr.mxu0 0.0
        %1037 = vmatpush2.msra.mxu0 0.0
        %1038 = vmatprep.subr.mxu0 0.0
        %1039 = vmatpush2.msra.mxu0 0.0
        %1040 = vmatprep.subr.mxu0 0.0
        %1041 = vmatpush2.msra.mxu0 0.0
        %1042 = vmatprep.subr.mxu0 0.0
        %1043 = vmatpush2.msra.mxu0 0.0
        %1044 = vmatprep.subr.mxu0 0.0
        %1045 = vmatpush2.msra.mxu0 0.0
        %1046 = vmatprep.subr.mxu0 0.0
        %1047 = vmatpush2.msra.mxu0 0.0
        %1048 = vmatprep.subr.mxu0 0.0
        %1049 = vmatpush2.msra.mxu0 0.0
        %1050 = vmatprep.subr.mxu0 0.0
        %1051 = vmatpush2.msra.mxu0 0.0
        %1052 = vmatprep.subr.mxu0 0.0
        %1053 = vmatpush2.msra.mxu0 0.0
        %1054 = vmatprep.subr.mxu0 0.0
        %1055 = vmatpush2.msra.mxu0 0.0
        %1056 = vmatprep.mubr.f32.mxu0 0.0
        %1057 = vmatmul.mubr.f32.gmra.mxu0 %v977
        %v1058 = vpop.f32.mrf.mxu0
        %v1059 = vadd.f32 0.0, %v1058
        %v1060 = vpop.f32.mrf.mxu0
        %1061 = vmatprep.mubr.f32.mxu0 0.0
        %1062 = vmatmul.mubr.f32.gmra.mxu0 %v980
        %v1063 = vpop.f32.mrf.mxu0
        %v1064 = vadd.f32 0.0, %v1063
        %v1065 = vpop.f32.mrf.mxu0
        %1066 = vmatprep.mubr.f32.mxu0 0.0
        %1067 = vmatmul.mubr.f32.gmra.mxu0 %v983
        %v1068 = vpop.f32.mrf.mxu0
        %v1069 = vadd.f32 0.0, %v1068
        %v1070 = vpop.f32.mrf.mxu0
        %1071 = vmatprep.mubr.f32.mxu0 0.0
        %1072 = vmatmul.mubr.f32.gmra.mxu0 %v986
        %v1073 = vpop.f32.mrf.mxu0
        %v1074 = vadd.f32 0.0, %v1073
        %v1075 = vpop.f32.mrf.mxu0
        %1076 = vdwg.mxu0
        %v1078 = vsel %vm805, %v971, 0
        %v1081 = vsel %vm805, %v972, 0
        %v1084 = vsel %vm805, %v973, 0
        %v1087 = vsel %vm805, %v974, 0
        %1089 = vmatprep.subr.mxu0 0.0
        %1090 = vmatpush1.msra.mxu0 0.0
        %1091 = vmatprep.subr.mxu0 0.0
        %1092 = vmatpush1.msra.mxu0 0.0
        %1093 = vmatprep.subr.mxu0 0.0
        %1094 = vmatpush1.msra.mxu0 0.0
        %1095 = vmatprep.subr.mxu0 0.0
        %1096 = vmatpush1.msra.mxu0 0.0
        %1097 = vmatprep.subr.mxu0 0.0
        %1098 = vmatpush1.msra.mxu0 0.0
        %1099 = vmatprep.subr.mxu0 0.0
        %1100 = vmatpush1.msra.mxu0 0.0
        %1101 = vmatprep.subr.mxu0 0.0
        %1102 = vmatpush1.msra.mxu0 0.0
        %1103 = vmatprep.subr.mxu0 0.0
        %1104 = vmatpush1.msra.mxu0 0.0
        %1105 = vmatprep.subr.mxu0 0.0
        %1106 = vmatpush1.msra.mxu0 0.0
        %1107 = vmatprep.subr.mxu0 0.0
        %1108 = vmatpush1.msra.mxu0 0.0
        %1109 = vmatprep.subr.mxu0 0.0
        %1110 = vmatpush1.msra.mxu0 0.0
        %1111 = vmatprep.subr.mxu0 0.0
        %1112 = vmatpush1.msra.mxu0 0.0
        %1113 = vmatprep.subr.mxu0 0.0
        %1114 = vmatpush1.msra.mxu0 0.0
        %1115 = vmatprep.subr.mxu0 0.0
        %1116 = vmatpush1.msra.mxu0 0.0
        %1117 = vmatprep.subr.mxu0 0.0
        %1118 = vmatpush1.msra.mxu0 0.0
        %1119 = vmatprep.subr.mxu0 0.0
        %1120 = vmatpush1.msra.mxu0 %v990
        %1121 = vmatprep.subr.mxu0 0.0
        %1122 = vmatpush2.msra.mxu0 0.0
        %1123 = vmatprep.subr.mxu0 0.0
        %1124 = vmatpush2.msra.mxu0 0.0
        %1125 = vmatprep.subr.mxu0 0.0
        %1126 = vmatpush2.msra.mxu0 0.0
        %1127 = vmatprep.subr.mxu0 0.0
        %1128 = vmatpush2.msra.mxu0 0.0
        %1129 = vmatprep.subr.mxu0 0.0
        %1130 = vmatpush2.msra.mxu0 0.0
        %1131 = vmatprep.subr.mxu0 0.0
        %1132 = vmatpush2.msra.mxu0 0.0
        %1133 = vmatprep.subr.mxu0 0.0
        %1134 = vmatpush2.msra.mxu0 0.0
        %1135 = vmatprep.subr.mxu0 0.0
        %1136 = vmatpush2.msra.mxu0 0.0
        %1137 = vmatprep.subr.mxu0 0.0
        %1138 = vmatpush2.msra.mxu0 0.0
        %1139 = vmatprep.subr.mxu0 0.0
        %1140 = vmatpush2.msra.mxu0 0.0
        %1141 = vmatprep.subr.mxu0 0.0
        %1142 = vmatpush2.msra.mxu0 0.0
        %1143 = vmatprep.subr.mxu0 0.0
        %1144 = vmatpush2.msra.mxu0 0.0
        %1145 = vmatprep.subr.mxu0 0.0
        %1146 = vmatpush2.msra.mxu0 0.0
        %1147 = vmatprep.subr.mxu0 0.0
        %1148 = vmatpush2.msra.mxu0 0.0
        %1149 = vmatprep.subr.mxu0 0.0
        %1150 = vmatpush2.msra.mxu0 0.0
        %1151 = vmatprep.subr.mxu0 0.0
        %1152 = vmatpush2.msra.mxu0 0.0
        %1153 = vmatprep.mubr.f32.mxu0 0.0
        %1154 = vmatmul.mubr.f32.gmra.mxu0 %v1078
        %v1155 = vpop.f32.mrf.mxu0
        %v1156 = vadd.f32 0.0, %v1155
        %v1157 = vpop.f32.mrf.mxu0
        %1158 = vmatprep.mubr.f32.mxu0 0.0
        %1159 = vmatmul.mubr.f32.gmra.mxu0 %v1081
        %v1160 = vpop.f32.mrf.mxu0
        %v1161 = vadd.f32 0.0, %v1160
        %v1162 = vpop.f32.mrf.mxu0
        %1163 = vmatprep.mubr.f32.mxu0 0.0
        %1164 = vmatmul.mubr.f32.gmra.mxu0 %v1084
        %v1165 = vpop.f32.mrf.mxu0
        %v1166 = vadd.f32 0.0, %v1165
        %v1167 = vpop.f32.mrf.mxu0
        %1168 = vmatprep.mubr.f32.mxu0 0.0
        %1169 = vmatmul.mubr.f32.gmra.mxu0 %v1087
        %v1170 = vpop.f32.mrf.mxu0
        %v1171 = vadd.f32 0.0, %v1170
        %v1172 = vpop.f32.mrf.mxu0
        %1173 = vdwg.mxu0
        %v1174 = vmul.f32 %v561, %v1059
        %v1175 = vmul.f32 %v566, %v1064
        %v1176 = vmul.f32 %v571, %v1069
        %v1177 = vmul.f32 %v576, %v1074
        %v1178 = vadd.f32 %v1174, %v1156
        %v1179 = vadd.f32 %v1175, %v1161
        %v1180 = vadd.f32 %v1176, %v1166
        %v1181 = vadd.f32 %v1177, %v1171
        %v1182 = vmul.f32 %v1178, 1.442695
        %v1183 = vpow.pop %v1182
        %v1184 = vmul.f32 %v1179, 1.442695
        %v1185 = vpow.pop %v1184
        %v1186 = vmul.f32 %v1180, 1.442695
        %v1187 = vpow.pop %v1186
        %v1188 = vmul.f32 %v1181, 1.442695
        %v1189 = vpow.pop %v1188
        %v1190 = vadd.f32 %v1183, 2.0
        %v1191 = vadd.f32 %v1185, 2.0
        %v1192 = vadd.f32 %v1187, 2.0
        %v1193 = vadd.f32 %v1189, 2.0
        %v1194 = vmul.f32 %v1183, %v1190
        %v1195 = vmul.f32 %v1185, %v1191
        %v1196 = vmul.f32 %v1187, %v1192
        %v1197 = vmul.f32 %v1189, %v1193
        %v1198 = vadd.f32 %v1194, 2.0
        %v1199 = vadd.f32 %v1195, 2.0
        %v1200 = vadd.f32 %v1196, 2.0
        %v1201 = vadd.f32 %v1197, 2.0
        %v1202 = vmul.f32 %v1178, 2.0
        %v1203 = vmul.f32 %v1179, 2.0
        %v1204 = vmul.f32 %v1180, 2.0
        %v1205 = vmul.f32 %v1181, 2.0
        %v1206 = vrcp.pop %v1198
        %v1207 = vmul.f32 %v1202, %v1206
        %v1208 = vrcp.pop %v1199
        %v1209 = vmul.f32 %v1203, %v1208
        %v1210 = vrcp.pop %v1200
        %v1211 = vmul.f32 %v1204, %v1210
        %v1212 = vrcp.pop %v1201
        %v1213 = vmul.f32 %v1205, %v1212
        %v1214 = vsub.f32 %v1178, %v1207
        %v1215 = vsub.f32 %v1179, %v1209
        %v1216 = vsub.f32 %v1180, %v1211
        %v1217 = vsub.f32 %v1181, %v1213
        %v1218 = vld [vmem:[%s8] sm:$0xff]
        %v1219 = vld [vmem:[%s9] sm:$0xff]
        %1221 = vset.pattern.permute.xlu0 0
        %1222 = vperm.xlu0 %1221, %v1219
        %v1223 = vpop.permute.xlu0 %1222
        %v1226 = vsel %vm481, %v1218, 0
        %1228 = vmatprep.subr.mxu0 0.0
        %1229 = vmatpush1.msra.mxu0 0.0
        %1230 = vmatprep.subr.mxu0 0.0
        %1231 = vmatpush1.msra.mxu0 0.0
        %1232 = vmatprep.subr.mxu0 0.0
        %1233 = vmatpush1.msra.mxu0 0.0
        %1234 = vmatprep.subr.mxu0 0.0
        %1235 = vmatpush1.msra.mxu0 0.0
        %1236 = vmatprep.subr.mxu0 0.0
        %1237 = vmatpush1.msra.mxu0 0.0
        %1238 = vmatprep.subr.mxu0 0.0
        %1239 = vmatpush1.msra.mxu0 0.0
        %1240 = vmatprep.subr.mxu0 0.0
        %1241 = vmatpush1.msra.mxu0 0.0
        %1242 = vmatprep.subr.mxu0 0.0
        %1243 = vmatpush1.msra.mxu0 0.0
        %1244 = vmatprep.subr.mxu0 0.0
        %1245 = vmatpush1.msra.mxu0 0.0
        %1246 = vmatprep.subr.mxu0 0.0
        %1247 = vmatpush1.msra.mxu0 0.0
        %1248 = vmatprep.subr.mxu0 0.0
        %1249 = vmatpush1.msra.mxu0 0.0
        %1250 = vmatprep.subr.mxu0 0.0
        %1251 = vmatpush1.msra.mxu0 0.0
        %1252 = vmatprep.subr.mxu0 0.0
        %1253 = vmatpush1.msra.mxu0 %v1217
        %1254 = vmatprep.subr.mxu0 0.0
        %1255 = vmatpush1.msra.mxu0 %v1216
        %1256 = vmatprep.subr.mxu0 0.0
        %1257 = vmatpush1.msra.mxu0 %v1215
        %1258 = vmatprep.subr.mxu0 0.0
        %1259 = vmatpush1.msra.mxu0 %v1214
        %1260 = vmatprep.subr.mxu0 0.0
        %1261 = vmatpush2.msra.mxu0 0.0
        %1262 = vmatprep.subr.mxu0 0.0
        %1263 = vmatpush2.msra.mxu0 0.0
        %1264 = vmatprep.subr.mxu0 0.0
        %1265 = vmatpush2.msra.mxu0 0.0
        %1266 = vmatprep.subr.mxu0 0.0
        %1267 = vmatpush2.msra.mxu0 0.0
        %1268 = vmatprep.subr.mxu0 0.0
        %1269 = vmatpush2.msra.mxu0 0.0
        %1270 = vmatprep.subr.mxu0 0.0
        %1271 = vmatpush2.msra.mxu0 0.0
        %1272 = vmatprep.subr.mxu0 0.0
        %1273 = vmatpush2.msra.mxu0 0.0
        %1274 = vmatprep.subr.mxu0 0.0
        %1275 = vmatpush2.msra.mxu0 0.0
        %1276 = vmatprep.subr.mxu0 0.0
        %1277 = vmatpush2.msra.mxu0 0.0
        %1278 = vmatprep.subr.mxu0 0.0
        %1279 = vmatpush2.msra.mxu0 0.0
        %1280 = vmatprep.subr.mxu0 0.0
        %1281 = vmatpush2.msra.mxu0 0.0
        %1282 = vmatprep.subr.mxu0 0.0
        %1283 = vmatpush2.msra.mxu0 0.0
        %1284 = vmatprep.subr.mxu0 0.0
        %1285 = vmatpush2.msra.mxu0 0.0
        %1286 = vmatprep.subr.mxu0 0.0
        %1287 = vmatpush2.msra.mxu0 0.0
        %1288 = vmatprep.subr.mxu0 0.0
        %1289 = vmatpush2.msra.mxu0 0.0
        %1290 = vmatprep.subr.mxu0 0.0
        %1291 = vmatpush2.msra.mxu0 0.0
        %1292 = vmatprep.mubr.f32.mxu0 0.0
        %1293 = vmatmul.mubr.f32.gmra.mxu0 %v1226
        %v1294 = vpop.f32.mrf.mxu0
        %v1295 = vadd.f32 %v1223, %v1294
        %v1296 = vpop.f32.mrf.mxu0
        %1297 = vdwg.mxu0
        %vm1298 = vcmask 130048
        %1299 = vst.msk [vmem:[%s352] sm:$0xff] %vm1298, %v1295
        %s1300 = sand.u32 %s247, 1
        %s1301 = scalar_lea.sflag [#allocation4], %s1300
        %s1302 = sand.u32 %s247, 1
        %s1303 = smul.addr %s1302, 8
        %s1304 = scalar_lea.vmem [#allocation3], %s1303
        // Predicated region
        $region61: #{tpu_custom_call.1} parent=59 // pred_check
          %p1305 = pneg %p257
        $region62: #{tpu_custom_call.1} parent=59 // pred_check_branch
          %1307 = sbr.rel (%p1305) target = $region64
        $region63: #{tpu_custom_call.1} parent=59 // pred_region
          %s1309 = ssub.s32 128, 128
          %1310 = vsyncadd %s1301, %s1309
          %s1311 = smul.addr %s24, 128
          %s1312 = scalar_lea.hbm %s10, %s1311
          %s1314 = sshll.u32 %s1304, 4
          %s1315 = int_to_ptr.vmem [resolvable:$true] %s1314
          %1317 = dma.vmem_to_hbm [thread:$0]  %s1315, 128, %s1312, %s1301
        $region64: #{tpu_custom_call.1} parent=59 // pred_fallthru
          _
      $region60: #{tpu_custom_call.1} parent=5 // pred_fallthru
        _
      %p1318 = scmp.le.s32.totalorder 2, %s19
      // Predicated region
      $region65: #{tpu_custom_call.1} parent=5 // pred_check
        %p1319 = pneg %p1318
      $region66: #{tpu_custom_call.1} parent=5 // pred_check_branch
        %1321 = sbr.rel (%p1319) target = $region68
      $region67: #{tpu_custom_call.1} parent=5 // pred_region
        %s1322 = ssub.s32 %s19, 2
        // Predicated region
        $region69: #{tpu_custom_call.1} parent=67 // pred_check
          %p1323 = pneg %p263
        $region70: #{tpu_custom_call.1} parent=67 // pred_check_branch
          %1325 = sbr.rel (%p1323) target = $region72
        $region71: #{tpu_custom_call.1} parent=67 // pred_region
          %s1326 = sand.u32 %s248, 1
          %s1327 = scalar_lea.sflag [#allocation4], %s1326
          %s1328 = sand.u32 %s248, 1
          %s1329 = smul.addr %s1328, 8
          %s1330 = scalar_lea.vmem [#allocation3], %s1329
          %1331 = dma.done %s1327, 128
        $region72: #{tpu_custom_call.1} parent=67 // pred_fallthru
          _
      $region68: #{tpu_custom_call.1} parent=5 // pred_fallthru
        _
    $region6: #{tpu_custom_call.1} parent=1 // loop_footer
      %s23 = sadd.s32 1, %s19
    $region7: #{tpu_custom_call.1} parent=1 // loop_footer_branch
      %18 = sbr.rel target = $region3
    $region8: #{tpu_custom_call.1} parent=1 // loop_exit
      _
    %1332 = vsyncpa [#allocation4], 1
    %s1333 = scalar_lea.sflag [#allocation4], 1
    %1334 = vsyncpa %s1333, 1

</llo_original>
